<compile_context>
chip_gen: v7x
topology: tpu7x:2x2x1
jax: 0.10.0
libtpu: 0.0.40
codegen_flags: <defaults>
</compile_context>

<pallas_src>
import jax
import jax.numpy as jnp
from jax.experimental import pallas as pl
from jax.experimental.pallas import tpu as pltpu

LANE = 128
SUBLANE = 8


def _round_up(x, m):
    return (x + m - 1) // m * m


def _pad_axis(x, axis, target):
    pad = [(0, 0)] * x.ndim
    pad[axis] = (0, target - x.shape[axis])
    return jnp.pad(x, pad)


def _pad_gates(w, h_pad):
    """(rows, 3H) -> (rows, 3*h_pad): each gate (r|z|n) in its own 128-lane tile, zero pad."""
    rows, three_h = w.shape
    h = three_h // 3
    out = jnp.zeros((rows, 3 * h_pad), w.dtype)
    for g in range(3):
        out = out.at[:, g * h_pad:g * h_pad + h].set(w[:, g * h:(g + 1) * h])
    return out


def gru_lm_kernel(x_ref, len_ref, wih_ref, whh_ref, bih_ref, bhn_ref,
                  wfc_ref, bfc_ref, out_ref):
    """GRU recurrence + output linear, all operands resident in VMEM (padded, lane-dense).

    x_ref:   (T*Bp, Vp)   time-major embedded tokens (row t*Bp + b), bf16
    len_ref: (Bp, 1)      int32 sequence lengths (0 for batch pad rows)
    wih_ref: (Vp, 3*Hp)   input->gate weights, gate order r|z|n, one 128-lane tile/gate, bf16
    whh_ref: (Hp, 3*Hp)   hidden->gate weights, same layout, bf16
    bih_ref: (1, 3*Hp)    b_ih with the r/z thirds of b_hh already folded in, f32
    bhn_ref: (1, Hp)      b_hn (must stay inside r * (W_hn h + b_hn)), f32
    wfc_ref: (Hp, Op)     output projection, bf16
    bfc_ref: (1, Op)      output bias, f32
    out_ref: (Bp, Op)     f32
    """
    Bp = len_ref.shape[0]
    TBp = x_ref.shape[0]
    T = TBp // Bp
    Hp = whh_ref.shape[0]

    lengths = len_ref[...]                                     # (Bp, 1) int32

    # ---- Hoisted input projection: ONE matmul for all timesteps (no h dependence). ----
    # bf16 x bf16 -> f32 accumulate on the MXU; folded (b_ih + b_hh[r,z]) added once.
    x_proj = (jnp.dot(x_ref[...], wih_ref[...],
                      preferred_element_type=jnp.float32)
              + bih_ref[...])                                  # (T*Bp, 3*Hp) f32

    whh = whh_ref[...]                                         # (Hp, 3*Hp) bf16, resident
    bhn = jnp.broadcast_to(bhn_ref[...], (Bp, Hp))             # hoisted: broadcast ONCE

    h = jnp.zeros((Bp, Hp), jnp.float32)

    # ---- Fully unrolled recurrence (T static & small). ----
    # One fused (Bp,Hp)@(Hp,3*Hp) MXU matmul per step on the serial chain; gate slices are
    # 128-lane-tile aligned, per-step x_proj slices are 8-sublane aligned, sigmoid/tanh go to
    # the EUP, blends/masks to the VPU, and adjacent unrolled steps interleave.
    for t in range(T):
        gx = x_proj[t * Bp:(t + 1) * Bp]                       # (Bp, 3*Hp) aligned slice
        gh = jnp.dot(h.astype(whh.dtype), whh,
                     preferred_element_type=jnp.float32)       # (Bp, 3*Hp)
        r = jax.nn.sigmoid(gx[:, 0 * Hp:1 * Hp] + gh[:, 0 * Hp:1 * Hp])
        z = jax.nn.sigmoid(gx[:, 1 * Hp:2 * Hp] + gh[:, 1 * Hp:2 * Hp])
        n = jnp.tanh(gx[:, 2 * Hp:3 * Hp] + r * (gh[:, 2 * Hp:3 * Hp] + bhn))
        h_new = (1.0 - z) * n + z * h
        # packed-sequence semantics: freeze h once t >= length[b]
        h = jnp.where(t < lengths, h_new, h)

    # Lane-dense (Bp, Op) store -> unmasked vst.
    out_ref[...] = (jnp.dot(h.astype(wfc_ref.dtype), wfc_ref[...],
                            preferred_element_type=jnp.float32)
                    + bfc_ref[...])


def prepare_kernel_params(p, v_pad, h_pad, o_pad):
    """Zero-pad / re-tile the real-sized parameters into the lane-dense kernel layout."""
    H = p["w_hh"].shape[0]
    emb_p = _pad_axis(p["emb"], 1, v_pad)                               # (VOCAB, Vp)
    w_ih = _pad_axis(_pad_gates(p["w_ih"], h_pad), 0, v_pad)            # (Vp, 3*Hp)
    w_hh = _pad_axis(_pad_gates(p["w_hh"], h_pad), 0, h_pad)            # (Hp, 3*Hp)
    # Fold only the r/z thirds of b_hh into b_ih; b_hn must stay inside r*(W_hn h + b_hn).
    b_ih_folded = p["b_ih"].at[:, :2 * H].add(p["b_hh"][:, :2 * H])
    b_ih = _pad_gates(b_ih_folded, h_pad)                               # (1, 3*Hp)
    b_hn = _pad_axis(p["b_hh"][:, 2 * H:], 1, h_pad)                    # (1, Hp)
    w_fc = _pad_axis(_pad_axis(p["w_fc"], 0, h_pad), 1, o_pad)          # (Hp, Op)
    b_fc = _pad_axis(p["b_fc"], 1, o_pad)                               # (1, Op)
    return dict(emb=emb_p, w_ih=w_ih, w_hh=w_hh, b_ih=b_ih, b_hn=b_hn,
                w_fc=w_fc, b_fc=b_fc)


def language_model_forward(tokens, lengths, params):
    """tokens: (B, T) int32, lengths: (B,) int32 -> (1, B, out_size) f32 (== out_fc(h_n))."""
    B, T = tokens.shape
    V = params["emb"].shape[1]
    H = params["w_hh"].shape[0]
    O = params["w_fc"].shape[-1]

    V_pad = _round_up(V, LANE)
    H_pad = _round_up(H, LANE)
    O_pad = _round_up(O, LANE)
    B_pad = _round_up(B, SUBLANE)

    kp = prepare_kernel_params(params, V_pad, H_pad, O_pad)

    # Batch padding: zero token rows, zero lengths -> pad rows freeze at h=0 and are sliced off.
    tokens_p = jnp.zeros((B_pad, T), jnp.int32).at[:B].set(tokens.astype(jnp.int32))
    lengths_p = jnp.zeros((B_pad,), jnp.int32).at[:B].set(lengths.astype(jnp.int32))

    # Embedding gathered directly time-major and flattened to (T*B_pad, V_pad) so the kernel's
    # input projection is a single lane-dense 2-D matmul.
    # TODO(synk): at scale, gather inside the kernel (scalar-prefetched ids + pl.Element row
    #             gather on emb) to avoid the extra (T*B, V) HBM round-trip.
    x_tm = kp["emb"][tokens_p.T].reshape(T * B_pad, V_pad)              # (T*Bp, Vp) bf16
    len2d = lengths_p.reshape(B_pad, 1)

    cost = pl.CostEstimate(
        flops=(2 * T * B_pad * V_pad * 3 * H_pad
               + 2 * T * B_pad * H_pad * 3 * H_pad
               + 2 * B_pad * H_pad * O_pad),
        transcendentals=T * B_pad * 3 * H_pad,
        bytes_accessed=int(x_tm.size * x_tm.dtype.itemsize
                           + sum(int(v.size) * v.dtype.itemsize
                                 for k, v in kp.items() if k != "emb")
                           + B_pad * O_pad * 4),
    )

    # Actual VMEM footprint (inputs + f32 x_proj + output) with headroom, capped at 32 MiB so
    # it never requests v7x's entire 64 MiB per-core VMEM.
    resident_bytes = int(x_tm.size * x_tm.dtype.itemsize
                         + T * B_pad * 3 * H_pad * 4          # hoisted x_proj (f32)
                         + sum(int(v.size) * v.dtype.itemsize
                               for k, v in kp.items() if k != "emb")
                         + B_pad * O_pad * 4)
    vmem_limit = min(32 * 1024 * 1024, max(4 * 1024 * 1024, 4 * resident_bytes))

    vspec = pl.BlockSpec(memory_space=pltpu.MemorySpace.VMEM)
    out_pad = pl.pallas_call(
        gru_lm_kernel,
        out_shape=jax.ShapeDtypeStruct((B_pad, O_pad), jnp.float32),
        in_specs=[vspec] * 8,
        out_specs=vspec,
        compiler_params=pltpu.CompilerParams(vmem_limit_bytes=vmem_limit),
        cost_estimate=cost,
    )(x_tm, len2d, kp["w_ih"], kp["w_hh"], kp["b_ih"], kp["b_hn"],
      kp["w_fc"], kp["b_fc"])

    # TODO(synk): at realistic sizes, replace the gridless resident design with a grid=(T,)
    #             streamed pipeline + 'parallel' batch-tile axis (see header comment).
    return out_pad[:B, :O][None]                                        # (1, B, O)


def ref_forward(tokens, lengths, p):
    """Pure-JAX reference with the same precision policy (bf16 matmul inputs, f32 math)."""
    x = p["emb"][tokens].astype(jnp.float32)                   # (B, T, V)
    B, T, _ = x.shape
    H = p["w_hh"].shape[0]
    wih = p["w_ih"].astype(jnp.float32)
    whh = p["w_hh"].astype(jnp.float32)
    wfc = p["w_fc"].astype(jnp.float32)
    h = jnp.zeros((B, H), jnp.float32)
    for t in range(T):
        gx = x[:, t] @ wih + p["b_ih"]
        gh = h.astype(jnp.bfloat16).astype(jnp.float32) @ whh + p["b_hh"]
        r = jax.nn.sigmoid(gx[:, :H] + gh[:, :H])
        z = jax.nn.sigmoid(gx[:, H:2 * H] + gh[:, H:2 * H])
        n = jnp.tanh(gx[:, 2 * H:] + r * gh[:, 2 * H:])
        h_new = (1.0 - z) * n + z * h
        h = jnp.where((t < lengths)[:, None], h_new, h)
    return (h.astype(jnp.bfloat16).astype(jnp.float32) @ wfc + p["b_fc"])[None]


def init_params(key, vocab, vec_size, hidden_size, out_size):
    ks = jax.random.split(key, 7)
    s = (1.0 / hidden_size) ** 0.5
    u = lambda k, shape: jax.random.uniform(k, shape, jnp.float32, -s, s)
    # TODO(synk): pretrained GloVe vectors / <bos>/<eos>/<pad> special rows replaced by a
    # deterministic random table (no file / network access allowed in-script).
    return {
        "emb":  jax.random.normal(ks[0], (vocab, vec_size), jnp.float32).astype(jnp.bfloat16),
        "w_ih": u(ks[1], (vec_size, 3 * hidden_size)).astype(jnp.bfloat16),   # r|z|n columns
        "w_hh": u(ks[2], (hidden_size, 3 * hidden_size)).astype(jnp.bfloat16),
        "b_ih": u(ks[3], (1, 3 * hidden_size)),
        "b_hh": u(ks[4], (1, 3 * hidden_size)),
        "w_fc": u(ks[5], (hidden_size, out_size)).astype(jnp.bfloat16),
        "b_fc": u(ks[6], (1, out_size)),
    }


if __name__ == "__main__":
    B, T = 2, 8                        # batch of 2 "sentences", max length 8
    VOCAB, V, H, O = 64, 32, 32, 16    # small vec_size / hidden_size / out_size

    key = jax.random.PRNGKey(0)
    kp, kt = jax.random.split(key)
    params = init_params(kp, VOCAB, V, H, O)

    tokens = jax.random.randint(kt, (B, T), 0, VOCAB - 1, dtype=jnp.int32)
    pad_idx = VOCAB - 1
    lengths = jnp.array([T, T - 3], dtype=jnp.int32)
    # pad positions beyond each sentence's length (masked out by the recurrence anyway)
    pos = jnp.arange(T)[None, :]
    tokens = jnp.where(pos < lengths[:, None], tokens, pad_idx)

    out = jax.block_until_ready(language_model_forward(tokens, lengths, params))
    ref = jax.block_until_ready(ref_forward(tokens, lengths, params))

    assert out.shape == (1, B, O), out.shape
    err = float(jnp.max(jnp.abs(out - ref)))
    assert err < 2e-2, err
    print("KERNEL_OK")
</pallas_src>

<mosaic_0001>
module attributes {stable_mosaic.version = 11 : i64} {
  func.func @gru_lm_kernel(%arg0: memref<64x128xbf16, #tpu.memory_space<vmem>>, %arg1: memref<8x1xi32, #tpu.memory_space<vmem>>, %arg2: memref<128x384xbf16, #tpu.memory_space<vmem>>, %arg3: memref<128x384xbf16, #tpu.memory_space<vmem>>, %arg4: memref<1x384xf32, #tpu.memory_space<vmem>>, %arg5: memref<1x128xf32, #tpu.memory_space<vmem>>, %arg6: memref<128x128xbf16, #tpu.memory_space<vmem>>, %arg7: memref<1x128xf32, #tpu.memory_space<vmem>>, %arg8: memref<8x128xf32, #tpu.memory_space<vmem>>) attributes {dimension_semantics = [], scalar_prefetch = 0 : i64, scratch_operands = 0 : i64, tpu.core_type = #tpu.core_type<tc>} {
    %c0 = arith.constant 0 : index
    %c0_0 = arith.constant 0 : index
    %0 = vector.load %arg1[%c0, %c0_0] : memref<8x1xi32, #tpu.memory_space<vmem>>, vector<8x1xi32>
    %c0_1 = arith.constant 0 : index
    %c0_2 = arith.constant 0 : index
    %1 = vector.load %arg0[%c0_1, %c0_2] : memref<64x128xbf16, #tpu.memory_space<vmem>>, vector<64x128xbf16>
    %c0_3 = arith.constant 0 : index
    %c0_4 = arith.constant 0 : index
    %2 = vector.load %arg2[%c0_3, %c0_4] : memref<128x384xbf16, #tpu.memory_space<vmem>>, vector<128x384xbf16>
    %cst = arith.constant dense<0.000000e+00> : vector<64x384xf32>
    %3 = tpu.matmul %1, %2, %cst {dimension_numbers = #tpu.dot_dimension_numbers<[1], [0], [0], [1], [0, 0, 1, 1], [], []>} : vector<64x128xbf16>, vector<128x384xbf16>, vector<64x384xf32> -> vector<64x384xf32>
    %c0_5 = arith.constant 0 : index
    %c0_6 = arith.constant 0 : index
    %4 = vector.load %arg4[%c0_5, %c0_6] : memref<1x384xf32, #tpu.memory_space<vmem>>, vector<1x384xf32>
    %5 = vector.broadcast %4 : vector<1x384xf32> to vector<64x384xf32>
    %6 = arith.addf %3, %5 : vector<64x384xf32>
    %c0_7 = arith.constant 0 : index
    %c0_8 = arith.constant 0 : index
    %7 = vector.load %arg3[%c0_7, %c0_8] : memref<128x384xbf16, #tpu.memory_space<vmem>>, vector<128x384xbf16>
    %c0_9 = arith.constant 0 : index
    %c0_10 = arith.constant 0 : index
    %8 = vector.load %arg5[%c0_9, %c0_10] : memref<1x128xf32, #tpu.memory_space<vmem>>, vector<1x128xf32>
    %9 = vector.shape_cast %8 : vector<1x128xf32> to vector<1x128xf32>
    %10 = vector.broadcast %9 : vector<1x128xf32> to vector<8x128xf32>
    %cst_11 = arith.constant 0.000000e+00 : f32
    %11 = vector.broadcast %cst_11 : f32 to vector<8x128xf32>
    %12 = vector.extract_strided_slice %6 {offsets = [0, 0], sizes = [8, 384], strides = [1, 1]} : vector<64x384xf32> to vector<8x384xf32>
    %13 = arith.truncf %11 : vector<8x128xf32> to vector<8x128xbf16>
    %cst_12 = arith.constant dense<0.000000e+00> : vector<8x384xf32>
    %14 = tpu.matmul %13, %7, %cst_12 {dimension_numbers = #tpu.dot_dimension_numbers<[1], [0], [0], [1], [0, 0, 1, 1], [], []>} : vector<8x128xbf16>, vector<128x384xbf16>, vector<8x384xf32> -> vector<8x384xf32>
    %15 = vector.extract_strided_slice %12 {offsets = [0, 0], sizes = [8, 128], strides = [1, 1]} : vector<8x384xf32> to vector<8x128xf32>
    %16 = vector.extract_strided_slice %14 {offsets = [0, 0], sizes = [8, 128], strides = [1, 1]} : vector<8x384xf32> to vector<8x128xf32>
    %17 = arith.addf %15, %16 : vector<8x128xf32>
    %18 = arith.negf %17 : vector<8x128xf32>
    %19 = math.exp %18 : vector<8x128xf32>
    %cst_13 = arith.constant 1.000000e+00 : f32
    %20 = vector.broadcast %cst_13 : f32 to vector<8x128xf32>
    %21 = arith.addf %20, %19 : vector<8x128xf32>
    %22 = arith.divf %20, %21 : vector<8x128xf32>
    %23 = vector.extract_strided_slice %12 {offsets = [0, 128], sizes = [8, 128], strides = [1, 1]} : vector<8x384xf32> to vector<8x128xf32>
    %24 = vector.extract_strided_slice %14 {offsets = [0, 128], sizes = [8, 128], strides = [1, 1]} : vector<8x384xf32> to vector<8x128xf32>
    %25 = arith.addf %23, %24 : vector<8x128xf32>
    %26 = arith.negf %25 : vector<8x128xf32>
    %27 = math.exp %26 : vector<8x128xf32>
    %cst_14 = arith.constant 1.000000e+00 : f32
    %28 = vector.broadcast %cst_14 : f32 to vector<8x128xf32>
    %29 = arith.addf %28, %27 : vector<8x128xf32>
    %30 = arith.divf %28, %29 : vector<8x128xf32>
    %31 = vector.extract_strided_slice %12 {offsets = [0, 256], sizes = [8, 128], strides = [1, 1]} : vector<8x384xf32> to vector<8x128xf32>
    %32 = vector.extract_strided_slice %14 {offsets = [0, 256], sizes = [8, 128], strides = [1, 1]} : vector<8x384xf32> to vector<8x128xf32>
    %33 = arith.addf %32, %10 : vector<8x128xf32>
    %34 = arith.mulf %22, %33 : vector<8x128xf32>
    %35 = arith.addf %31, %34 : vector<8x128xf32>
    %36 = math.tanh %35 : vector<8x128xf32>
    %cst_15 = arith.constant 1.000000e+00 : f32
    %37 = vector.broadcast %cst_15 : f32 to vector<8x128xf32>
    %38 = arith.subf %37, %30 : vector<8x128xf32>
    %39 = arith.mulf %38, %36 : vector<8x128xf32>
    %40 = arith.mulf %30, %11 : vector<8x128xf32>
    %41 = arith.addf %39, %40 : vector<8x128xf32>
    %c0_i32 = arith.constant 0 : i32
    %42 = vector.broadcast %c0_i32 : i32 to vector<8x1xi32>
    %43 = arith.cmpi sgt, %0, %42 : vector<8x1xi32>
    %44 = vector.shape_cast %43 : vector<8x1xi1> to vector<8x1xi1>
    %45 = vector.broadcast %44 : vector<8x1xi1> to vector<8x128xi1>
    %46 = arith.select %45, %41, %11 : vector<8x128xi1>, vector<8x128xf32>
    %47 = vector.extract_strided_slice %6 {offsets = [8, 0], sizes = [8, 384], strides = [1, 1]} : vector<64x384xf32> to vector<8x384xf32>
    %48 = arith.truncf %46 : vector<8x128xf32> to vector<8x128xbf16>
    %cst_16 = arith.constant dense<0.000000e+00> : vector<8x384xf32>
    %49 = tpu.matmul %48, %7, %cst_16 {dimension_numbers = #tpu.dot_dimension_numbers<[1], [0], [0], [1], [0, 0, 1, 1], [], []>} : vector<8x128xbf16>, vector<128x384xbf16>, vector<8x384xf32> -> vector<8x384xf32>
    %50 = vector.extract_strided_slice %47 {offsets = [0, 0], sizes = [8, 128], strides = [1, 1]} : vector<8x384xf32> to vector<8x128xf32>
    %51 = vector.extract_strided_slice %49 {offsets = [0, 0], sizes = [8, 128], strides = [1, 1]} : vector<8x384xf32> to vector<8x128xf32>
    %52 = arith.addf %50, %51 : vector<8x128xf32>
    %53 = arith.negf %52 : vector<8x128xf32>
    %54 = math.exp %53 : vector<8x128xf32>
    %cst_17 = arith.constant 1.000000e+00 : f32
    %55 = vector.broadcast %cst_17 : f32 to vector<8x128xf32>
    %56 = arith.addf %55, %54 : vector<8x128xf32>
    %57 = arith.divf %55, %56 : vector<8x128xf32>
    %58 = vector.extract_strided_slice %47 {offsets = [0, 128], sizes = [8, 128], strides = [1, 1]} : vector<8x384xf32> to vector<8x128xf32>
    %59 = vector.extract_strided_slice %49 {offsets = [0, 128], sizes = [8, 128], strides = [1, 1]} : vector<8x384xf32> to vector<8x128xf32>
    %60 = arith.addf %58, %59 : vector<8x128xf32>
    %61 = arith.negf %60 : vector<8x128xf32>
    %62 = math.exp %61 : vector<8x128xf32>
    %cst_18 = arith.constant 1.000000e+00 : f32
    %63 = vector.broadcast %cst_18 : f32 to vector<8x128xf32>
    %64 = arith.addf %63, %62 : vector<8x128xf32>
    %65 = arith.divf %63, %64 : vector<8x128xf32>
    %66 = vector.extract_strided_slice %47 {offsets = [0, 256], sizes = [8, 128], strides = [1, 1]} : vector<8x384xf32> to vector<8x128xf32>
    %67 = vector.extract_strided_slice %49 {offsets = [0, 256], sizes = [8, 128], strides = [1, 1]} : vector<8x384xf32> to vector<8x128xf32>
    %68 = arith.addf %67, %10 : vector<8x128xf32>
    %69 = arith.mulf %57, %68 : vector<8x128xf32>
    %70 = arith.addf %66, %69 : vector<8x128xf32>
    %71 = math.tanh %70 : vector<8x128xf32>
    %cst_19 = arith.constant 1.000000e+00 : f32
    %72 = vector.broadcast %cst_19 : f32 to vector<8x128xf32>
    %73 = arith.subf %72, %65 : vector<8x128xf32>
    %74 = arith.mulf %73, %71 : vector<8x128xf32>
    %75 = arith.mulf %65, %46 : vector<8x128xf32>
    %76 = arith.addf %74, %75 : vector<8x128xf32>
    %c1_i32 = arith.constant 1 : i32
    %77 = vector.broadcast %c1_i32 : i32 to vector<8x1xi32>
    %78 = arith.cmpi sgt, %0, %77 : vector<8x1xi32>
    %79 = vector.shape_cast %78 : vector<8x1xi1> to vector<8x1xi1>
    %80 = vector.broadcast %79 : vector<8x1xi1> to vector<8x128xi1>
    %81 = arith.select %80, %76, %46 : vector<8x128xi1>, vector<8x128xf32>
    %82 = vector.extract_strided_slice %6 {offsets = [16, 0], sizes = [8, 384], strides = [1, 1]} : vector<64x384xf32> to vector<8x384xf32>
    %83 = arith.truncf %81 : vector<8x128xf32> to vector<8x128xbf16>
    %cst_20 = arith.constant dense<0.000000e+00> : vector<8x384xf32>
    %84 = tpu.matmul %83, %7, %cst_20 {dimension_numbers = #tpu.dot_dimension_numbers<[1], [0], [0], [1], [0, 0, 1, 1], [], []>} : vector<8x128xbf16>, vector<128x384xbf16>, vector<8x384xf32> -> vector<8x384xf32>
    %85 = vector.extract_strided_slice %82 {offsets = [0, 0], sizes = [8, 128], strides = [1, 1]} : vector<8x384xf32> to vector<8x128xf32>
    %86 = vector.extract_strided_slice %84 {offsets = [0, 0], sizes = [8, 128], strides = [1, 1]} : vector<8x384xf32> to vector<8x128xf32>
    %87 = arith.addf %85, %86 : vector<8x128xf32>
    %88 = arith.negf %87 : vector<8x128xf32>
    %89 = math.exp %88 : vector<8x128xf32>
    %cst_21 = arith.constant 1.000000e+00 : f32
    %90 = vector.broadcast %cst_21 : f32 to vector<8x128xf32>
    %91 = arith.addf %90, %89 : vector<8x128xf32>
    %92 = arith.divf %90, %91 : vector<8x128xf32>
    %93 = vector.extract_strided_slice %82 {offsets = [0, 128], sizes = [8, 128], strides = [1, 1]} : vector<8x384xf32> to vector<8x128xf32>
    %94 = vector.extract_strided_slice %84 {offsets = [0, 128], sizes = [8, 128], strides = [1, 1]} : vector<8x384xf32> to vector<8x128xf32>
    %95 = arith.addf %93, %94 : vector<8x128xf32>
    %96 = arith.negf %95 : vector<8x128xf32>
    %97 = math.exp %96 : vector<8x128xf32>
    %cst_22 = arith.constant 1.000000e+00 : f32
    %98 = vector.broadcast %cst_22 : f32 to vector<8x128xf32>
    %99 = arith.addf %98, %97 : vector<8x128xf32>
    %100 = arith.divf %98, %99 : vector<8x128xf32>
    %101 = vector.extract_strided_slice %82 {offsets = [0, 256], sizes = [8, 128], strides = [1, 1]} : vector<8x384xf32> to vector<8x128xf32>
    %102 = vector.extract_strided_slice %84 {offsets = [0, 256], sizes = [8, 128], strides = [1, 1]} : vector<8x384xf32> to vector<8x128xf32>
    %103 = arith.addf %102, %10 : vector<8x128xf32>
    %104 = arith.mulf %92, %103 : vector<8x128xf32>
    %105 = arith.addf %101, %104 : vector<8x128xf32>
    %106 = math.tanh %105 : vector<8x128xf32>
    %cst_23 = arith.constant 1.000000e+00 : f32
    %107 = vector.broadcast %cst_23 : f32 to vector<8x128xf32>
    %108 = arith.subf %107, %100 : vector<8x128xf32>
    %109 = arith.mulf %108, %106 : vector<8x128xf32>
    %110 = arith.mulf %100, %81 : vector<8x128xf32>
    %111 = arith.addf %109, %110 : vector<8x128xf32>
    %c2_i32 = arith.constant 2 : i32
    %112 = vector.broadcast %c2_i32 : i32 to vector<8x1xi32>
    %113 = arith.cmpi sgt, %0, %112 : vector<8x1xi32>
    %114 = vector.shape_cast %113 : vector<8x1xi1> to vector<8x1xi1>
    %115 = vector.broadcast %114 : vector<8x1xi1> to vector<8x128xi1>
    %116 = arith.select %115, %111, %81 : vector<8x128xi1>, vector<8x128xf32>
    %117 = vector.extract_strided_slice %6 {offsets = [24, 0], sizes = [8, 384], strides = [1, 1]} : vector<64x384xf32> to vector<8x384xf32>
    %118 = arith.truncf %116 : vector<8x128xf32> to vector<8x128xbf16>
    %cst_24 = arith.constant dense<0.000000e+00> : vector<8x384xf32>
    %119 = tpu.matmul %118, %7, %cst_24 {dimension_numbers = #tpu.dot_dimension_numbers<[1], [0], [0], [1], [0, 0, 1, 1], [], []>} : vector<8x128xbf16>, vector<128x384xbf16>, vector<8x384xf32> -> vector<8x384xf32>
    %120 = vector.extract_strided_slice %117 {offsets = [0, 0], sizes = [8, 128], strides = [1, 1]} : vector<8x384xf32> to vector<8x128xf32>
    %121 = vector.extract_strided_slice %119 {offsets = [0, 0], sizes = [8, 128], strides = [1, 1]} : vector<8x384xf32> to vector<8x128xf32>
    %122 = arith.addf %120, %121 : vector<8x128xf32>
    %123 = arith.negf %122 : vector<8x128xf32>
    %124 = math.exp %123 : vector<8x128xf32>
    %cst_25 = arith.constant 1.000000e+00 : f32
    %125 = vector.broadcast %cst_25 : f32 to vector<8x128xf32>
    %126 = arith.addf %125, %124 : vector<8x128xf32>
    %127 = arith.divf %125, %126 : vector<8x128xf32>
    %128 = vector.extract_strided_slice %117 {offsets = [0, 128], sizes = [8, 128], strides = [1, 1]} : vector<8x384xf32> to vector<8x128xf32>
    %129 = vector.extract_strided_slice %119 {offsets = [0, 128], sizes = [8, 128], strides = [1, 1]} : vector<8x384xf32> to vector<8x128xf32>
    %130 = arith.addf %128, %129 : vector<8x128xf32>
    %131 = arith.negf %130 : vector<8x128xf32>
    %132 = math.exp %131 : vector<8x128xf32>
    %cst_26 = arith.constant 1.000000e+00 : f32
    %133 = vector.broadcast %cst_26 : f32 to vector<8x128xf32>
    %134 = arith.addf %133, %132 : vector<8x128xf32>
    %135 = arith.divf %133, %134 : vector<8x128xf32>
    %136 = vector.extract_strided_slice %117 {offsets = [0, 256], sizes = [8, 128], strides = [1, 1]} : vector<8x384xf32> to vector<8x128xf32>
    %137 = vector.extract_strided_slice %119 {offsets = [0, 256], sizes = [8, 128], strides = [1, 1]} : vector<8x384xf32> to vector<8x128xf32>
    %138 = arith.addf %137, %10 : vector<8x128xf32>
    %139 = arith.mulf %127, %138 : vector<8x128xf32>
    %140 = arith.addf %136, %139 : vector<8x128xf32>
    %141 = math.tanh %140 : vector<8x128xf32>
    %cst_27 = arith.constant 1.000000e+00 : f32
    %142 = vector.broadcast %cst_27 : f32 to vector<8x128xf32>
    %143 = arith.subf %142, %135 : vector<8x128xf32>
    %144 = arith.mulf %143, %141 : vector<8x128xf32>
    %145 = arith.mulf %135, %116 : vector<8x128xf32>
    %146 = arith.addf %144, %145 : vector<8x128xf32>
    %c3_i32 = arith.constant 3 : i32
    %147 = vector.broadcast %c3_i32 : i32 to vector<8x1xi32>
    %148 = arith.cmpi sgt, %0, %147 : vector<8x1xi32>
    %149 = vector.shape_cast %148 : vector<8x1xi1> to vector<8x1xi1>
    %150 = vector.broadcast %149 : vector<8x1xi1> to vector<8x128xi1>
    %151 = arith.select %150, %146, %116 : vector<8x128xi1>, vector<8x128xf32>
    %152 = vector.extract_strided_slice %6 {offsets = [32, 0], sizes = [8, 384], strides = [1, 1]} : vector<64x384xf32> to vector<8x384xf32>
    %153 = arith.truncf %151 : vector<8x128xf32> to vector<8x128xbf16>
    %cst_28 = arith.constant dense<0.000000e+00> : vector<8x384xf32>
    %154 = tpu.matmul %153, %7, %cst_28 {dimension_numbers = #tpu.dot_dimension_numbers<[1], [0], [0], [1], [0, 0, 1, 1], [], []>} : vector<8x128xbf16>, vector<128x384xbf16>, vector<8x384xf32> -> vector<8x384xf32>
    %155 = vector.extract_strided_slice %152 {offsets = [0, 0], sizes = [8, 128], strides = [1, 1]} : vector<8x384xf32> to vector<8x128xf32>
    %156 = vector.extract_strided_slice %154 {offsets = [0, 0], sizes = [8, 128], strides = [1, 1]} : vector<8x384xf32> to vector<8x128xf32>
    %157 = arith.addf %155, %156 : vector<8x128xf32>
    %158 = arith.negf %157 : vector<8x128xf32>
    %159 = math.exp %158 : vector<8x128xf32>
    %cst_29 = arith.constant 1.000000e+00 : f32
    %160 = vector.broadcast %cst_29 : f32 to vector<8x128xf32>
    %161 = arith.addf %160, %159 : vector<8x128xf32>
    %162 = arith.divf %160, %161 : vector<8x128xf32>
    %163 = vector.extract_strided_slice %152 {offsets = [0, 128], sizes = [8, 128], strides = [1, 1]} : vector<8x384xf32> to vector<8x128xf32>
    %164 = vector.extract_strided_slice %154 {offsets = [0, 128], sizes = [8, 128], strides = [1, 1]} : vector<8x384xf32> to vector<8x128xf32>
    %165 = arith.addf %163, %164 : vector<8x128xf32>
    %166 = arith.negf %165 : vector<8x128xf32>
    %167 = math.exp %166 : vector<8x128xf32>
    %cst_30 = arith.constant 1.000000e+00 : f32
    %168 = vector.broadcast %cst_30 : f32 to vector<8x128xf32>
    %169 = arith.addf %168, %167 : vector<8x128xf32>
    %170 = arith.divf %168, %169 : vector<8x128xf32>
    %171 = vector.extract_strided_slice %152 {offsets = [0, 256], sizes = [8, 128], strides = [1, 1]} : vector<8x384xf32> to vector<8x128xf32>
    %172 = vector.extract_strided_slice %154 {offsets = [0, 256], sizes = [8, 128], strides = [1, 1]} : vector<8x384xf32> to vector<8x128xf32>
    %173 = arith.addf %172, %10 : vector<8x128xf32>
    %174 = arith.mulf %162, %173 : vector<8x128xf32>
    %175 = arith.addf %171, %174 : vector<8x128xf32>
    %176 = math.tanh %175 : vector<8x128xf32>
    %cst_31 = arith.constant 1.000000e+00 : f32
    %177 = vector.broadcast %cst_31 : f32 to vector<8x128xf32>
    %178 = arith.subf %177, %170 : vector<8x128xf32>
    %179 = arith.mulf %178, %176 : vector<8x128xf32>
    %180 = arith.mulf %170, %151 : vector<8x128xf32>
    %181 = arith.addf %179, %180 : vector<8x128xf32>
    %c4_i32 = arith.constant 4 : i32
    %182 = vector.broadcast %c4_i32 : i32 to vector<8x1xi32>
    %183 = arith.cmpi sgt, %0, %182 : vector<8x1xi32>
    %184 = vector.shape_cast %183 : vector<8x1xi1> to vector<8x1xi1>
    %185 = vector.broadcast %184 : vector<8x1xi1> to vector<8x128xi1>
    %186 = arith.select %185, %181, %151 : vector<8x128xi1>, vector<8x128xf32>
    %187 = vector.extract_strided_slice %6 {offsets = [40, 0], sizes = [8, 384], strides = [1, 1]} : vector<64x384xf32> to vector<8x384xf32>
    %188 = arith.truncf %186 : vector<8x128xf32> to vector<8x128xbf16>
    %cst_32 = arith.constant dense<0.000000e+00> : vector<8x384xf32>
    %189 = tpu.matmul %188, %7, %cst_32 {dimension_numbers = #tpu.dot_dimension_numbers<[1], [0], [0], [1], [0, 0, 1, 1], [], []>} : vector<8x128xbf16>, vector<128x384xbf16>, vector<8x384xf32> -> vector<8x384xf32>
    %190 = vector.extract_strided_slice %187 {offsets = [0, 0], sizes = [8, 128], strides = [1, 1]} : vector<8x384xf32> to vector<8x128xf32>
    %191 = vector.extract_strided_slice %189 {offsets = [0, 0], sizes = [8, 128], strides = [1, 1]} : vector<8x384xf32> to vector<8x128xf32>
    %192 = arith.addf %190, %191 : vector<8x128xf32>
    %193 = arith.negf %192 : vector<8x128xf32>
    %194 = math.exp %193 : vector<8x128xf32>
    %cst_33 = arith.constant 1.000000e+00 : f32
    %195 = vector.broadcast %cst_33 : f32 to vector<8x128xf32>
    %196 = arith.addf %195, %194 : vector<8x128xf32>
    %197 = arith.divf %195, %196 : vector<8x128xf32>
    %198 = vector.extract_strided_slice %187 {offsets = [0, 128], sizes = [8, 128], strides = [1, 1]} : vector<8x384xf32> to vector<8x128xf32>
    %199 = vector.extract_strided_slice %189 {offsets = [0, 128], sizes = [8, 128], strides = [1, 1]} : vector<8x384xf32> to vector<8x128xf32>
    %200 = arith.addf %198, %199 : vector<8x128xf32>
    %201 = arith.negf %200 : vector<8x128xf32>
    %202 = math.exp %201 : vector<8x128xf32>
    %cst_34 = arith.constant 1.000000e+00 : f32
    %203 = vector.broadcast %cst_34 : f32 to vector<8x128xf32>
    %204 = arith.addf %203, %202 : vector<8x128xf32>
    %205 = arith.divf %203, %204 : vector<8x128xf32>
    %206 = vector.extract_strided_slice %187 {offsets = [0, 256], sizes = [8, 128], strides = [1, 1]} : vector<8x384xf32> to vector<8x128xf32>
    %207 = vector.extract_strided_slice %189 {offsets = [0, 256], sizes = [8, 128], strides = [1, 1]} : vector<8x384xf32> to vector<8x128xf32>
    %208 = arith.addf %207, %10 : vector<8x128xf32>
    %209 = arith.mulf %197, %208 : vector<8x128xf32>
    %210 = arith.addf %206, %209 : vector<8x128xf32>
    %211 = math.tanh %210 : vector<8x128xf32>
    %cst_35 = arith.constant 1.000000e+00 : f32
    %212 = vector.broadcast %cst_35 : f32 to vector<8x128xf32>
    %213 = arith.subf %212, %205 : vector<8x128xf32>
    %214 = arith.mulf %213, %211 : vector<8x128xf32>
    %215 = arith.mulf %205, %186 : vector<8x128xf32>
    %216 = arith.addf %214, %215 : vector<8x128xf32>
    %c5_i32 = arith.constant 5 : i32
    %217 = vector.broadcast %c5_i32 : i32 to vector<8x1xi32>
    %218 = arith.cmpi sgt, %0, %217 : vector<8x1xi32>
    %219 = vector.shape_cast %218 : vector<8x1xi1> to vector<8x1xi1>
    %220 = vector.broadcast %219 : vector<8x1xi1> to vector<8x128xi1>
    %221 = arith.select %220, %216, %186 : vector<8x128xi1>, vector<8x128xf32>
    %222 = vector.extract_strided_slice %6 {offsets = [48, 0], sizes = [8, 384], strides = [1, 1]} : vector<64x384xf32> to vector<8x384xf32>
    %223 = arith.truncf %221 : vector<8x128xf32> to vector<8x128xbf16>
    %cst_36 = arith.constant dense<0.000000e+00> : vector<8x384xf32>
    %224 = tpu.matmul %223, %7, %cst_36 {dimension_numbers = #tpu.dot_dimension_numbers<[1], [0], [0], [1], [0, 0, 1, 1], [], []>} : vector<8x128xbf16>, vector<128x384xbf16>, vector<8x384xf32> -> vector<8x384xf32>
    %225 = vector.extract_strided_slice %222 {offsets = [0, 0], sizes = [8, 128], strides = [1, 1]} : vector<8x384xf32> to vector<8x128xf32>
    %226 = vector.extract_strided_slice %224 {offsets = [0, 0], sizes = [8, 128], strides = [1, 1]} : vector<8x384xf32> to vector<8x128xf32>
    %227 = arith.addf %225, %226 : vector<8x128xf32>
    %228 = arith.negf %227 : vector<8x128xf32>
    %229 = math.exp %228 : vector<8x128xf32>
    %cst_37 = arith.constant 1.000000e+00 : f32
    %230 = vector.broadcast %cst_37 : f32 to vector<8x128xf32>
    %231 = arith.addf %230, %229 : vector<8x128xf32>
    %232 = arith.divf %230, %231 : vector<8x128xf32>
    %233 = vector.extract_strided_slice %222 {offsets = [0, 128], sizes = [8, 128], strides = [1, 1]} : vector<8x384xf32> to vector<8x128xf32>
    %234 = vector.extract_strided_slice %224 {offsets = [0, 128], sizes = [8, 128], strides = [1, 1]} : vector<8x384xf32> to vector<8x128xf32>
    %235 = arith.addf %233, %234 : vector<8x128xf32>
    %236 = arith.negf %235 : vector<8x128xf32>
    %237 = math.exp %236 : vector<8x128xf32>
    %cst_38 = arith.constant 1.000000e+00 : f32
    %238 = vector.broadcast %cst_38 : f32 to vector<8x128xf32>
    %239 = arith.addf %238, %237 : vector<8x128xf32>
    %240 = arith.divf %238, %239 : vector<8x128xf32>
    %241 = vector.extract_strided_slice %222 {offsets = [0, 256], sizes = [8, 128], strides = [1, 1]} : vector<8x384xf32> to vector<8x128xf32>
    %242 = vector.extract_strided_slice %224 {offsets = [0, 256], sizes = [8, 128], strides = [1, 1]} : vector<8x384xf32> to vector<8x128xf32>
    %243 = arith.addf %242, %10 : vector<8x128xf32>
    %244 = arith.mulf %232, %243 : vector<8x128xf32>
    %245 = arith.addf %241, %244 : vector<8x128xf32>
    %246 = math.tanh %245 : vector<8x128xf32>
    %cst_39 = arith.constant 1.000000e+00 : f32
    %247 = vector.broadcast %cst_39 : f32 to vector<8x128xf32>
    %248 = arith.subf %247, %240 : vector<8x128xf32>
    %249 = arith.mulf %248, %246 : vector<8x128xf32>
    %250 = arith.mulf %240, %221 : vector<8x128xf32>
    %251 = arith.addf %249, %250 : vector<8x128xf32>
    %c6_i32 = arith.constant 6 : i32
    %252 = vector.broadcast %c6_i32 : i32 to vector<8x1xi32>
    %253 = arith.cmpi sgt, %0, %252 : vector<8x1xi32>
    %254 = vector.shape_cast %253 : vector<8x1xi1> to vector<8x1xi1>
    %255 = vector.broadcast %254 : vector<8x1xi1> to vector<8x128xi1>
    %256 = arith.select %255, %251, %221 : vector<8x128xi1>, vector<8x128xf32>
    %257 = vector.extract_strided_slice %6 {offsets = [56, 0], sizes = [8, 384], strides = [1, 1]} : vector<64x384xf32> to vector<8x384xf32>
    %258 = arith.truncf %256 : vector<8x128xf32> to vector<8x128xbf16>
    %cst_40 = arith.constant dense<0.000000e+00> : vector<8x384xf32>
    %259 = tpu.matmul %258, %7, %cst_40 {dimension_numbers = #tpu.dot_dimension_numbers<[1], [0], [0], [1], [0, 0, 1, 1], [], []>} : vector<8x128xbf16>, vector<128x384xbf16>, vector<8x384xf32> -> vector<8x384xf32>
    %260 = vector.extract_strided_slice %257 {offsets = [0, 0], sizes = [8, 128], strides = [1, 1]} : vector<8x384xf32> to vector<8x128xf32>
    %261 = vector.extract_strided_slice %259 {offsets = [0, 0], sizes = [8, 128], strides = [1, 1]} : vector<8x384xf32> to vector<8x128xf32>
    %262 = arith.addf %260, %261 : vector<8x128xf32>
    %263 = arith.negf %262 : vector<8x128xf32>
    %264 = math.exp %263 : vector<8x128xf32>
    %cst_41 = arith.constant 1.000000e+00 : f32
    %265 = vector.broadcast %cst_41 : f32 to vector<8x128xf32>
    %266 = arith.addf %265, %264 : vector<8x128xf32>
    %267 = arith.divf %265, %266 : vector<8x128xf32>
    %268 = vector.extract_strided_slice %257 {offsets = [0, 128], sizes = [8, 128], strides = [1, 1]} : vector<8x384xf32> to vector<8x128xf32>
    %269 = vector.extract_strided_slice %259 {offsets = [0, 128], sizes = [8, 128], strides = [1, 1]} : vector<8x384xf32> to vector<8x128xf32>
    %270 = arith.addf %268, %269 : vector<8x128xf32>
    %271 = arith.negf %270 : vector<8x128xf32>
    %272 = math.exp %271 : vector<8x128xf32>
    %cst_42 = arith.constant 1.000000e+00 : f32
    %273 = vector.broadcast %cst_42 : f32 to vector<8x128xf32>
    %274 = arith.addf %273, %272 : vector<8x128xf32>
    %275 = arith.divf %273, %274 : vector<8x128xf32>
    %276 = vector.extract_strided_slice %257 {offsets = [0, 256], sizes = [8, 128], strides = [1, 1]} : vector<8x384xf32> to vector<8x128xf32>
    %277 = vector.extract_strided_slice %259 {offsets = [0, 256], sizes = [8, 128], strides = [1, 1]} : vector<8x384xf32> to vector<8x128xf32>
    %278 = arith.addf %277, %10 : vector<8x128xf32>
    %279 = arith.mulf %267, %278 : vector<8x128xf32>
    %280 = arith.addf %276, %279 : vector<8x128xf32>
    %281 = math.tanh %280 : vector<8x128xf32>
    %cst_43 = arith.constant 1.000000e+00 : f32
    %282 = vector.broadcast %cst_43 : f32 to vector<8x128xf32>
    %283 = arith.subf %282, %275 : vector<8x128xf32>
    %284 = arith.mulf %283, %281 : vector<8x128xf32>
    %285 = arith.mulf %275, %256 : vector<8x128xf32>
    %286 = arith.addf %284, %285 : vector<8x128xf32>
    %c7_i32 = arith.constant 7 : i32
    %287 = vector.broadcast %c7_i32 : i32 to vector<8x1xi32>
    %288 = arith.cmpi sgt, %0, %287 : vector<8x1xi32>
    %289 = vector.shape_cast %288 : vector<8x1xi1> to vector<8x1xi1>
    %290 = vector.broadcast %289 : vector<8x1xi1> to vector<8x128xi1>
    %291 = arith.select %290, %286, %256 : vector<8x128xi1>, vector<8x128xf32>
    %292 = arith.truncf %291 : vector<8x128xf32> to vector<8x128xbf16>
    %c0_44 = arith.constant 0 : index
    %c0_45 = arith.constant 0 : index
    %293 = vector.load %arg6[%c0_44, %c0_45] : memref<128x128xbf16, #tpu.memory_space<vmem>>, vector<128x128xbf16>
    %cst_46 = arith.constant dense<0.000000e+00> : vector<8x128xf32>
    %294 = tpu.matmul %292, %293, %cst_46 {dimension_numbers = #tpu.dot_dimension_numbers<[1], [0], [0], [1], [0, 0, 1, 1], [], []>} : vector<8x128xbf16>, vector<128x128xbf16>, vector<8x128xf32> -> vector<8x128xf32>
    %c0_47 = arith.constant 0 : index
    %c0_48 = arith.constant 0 : index
    %295 = vector.load %arg7[%c0_47, %c0_48] : memref<1x128xf32, #tpu.memory_space<vmem>>, vector<1x128xf32>
    %296 = vector.broadcast %295 : vector<1x128xf32> to vector<8x128xf32>
    %297 = arith.addf %294, %296 : vector<8x128xf32>
    %c0_49 = arith.constant 0 : index
    %c0_50 = arith.constant 0 : index
    %298 = vector.load %arg8[%c0_49, %c0_50] : memref<8x128xf32, #tpu.memory_space<vmem>>, vector<8x128xf32>
    tpu.vector_store %arg8[%c0_49, %c0_50], %297 {strides = array<i32>} : memref<8x128xf32, #tpu.memory_space<vmem>>, vector<8x128xf32>,
    return
  }
}

</mosaic_0001>

<llo_original>
// kernel: tpu_custom_call.1
$region0: #{tpu_custom_call.1}
  #allocation0 [shape = 'u32[]', space=smem, size = 0x4, offset = 0x4, fixed_abs, tag = 'smem constant byte address 0x4 - core index']
  #allocation1 [shape = 'u32[144,128]{1,0:T(1,128)}', space=vmem, size = 0x12000, scoped, tag = 'internal scratch']
  %s0 = inlined_call_operand.hbm [shape: bf16[64,128], index: 0, kind: input, shape index: {}]
  %s1 = inlined_call_operand.vmem [shape: s32[8,1], index: 1, kind: input, shape index: {}]
  %s2 = inlined_call_operand.hbm [shape: bf16[128,384], index: 2, kind: input, shape index: {}]
  %s3 = inlined_call_operand.hbm [shape: bf16[128,384], index: 3, kind: input, shape index: {}]
  %s4 = inlined_call_operand.vmem [shape: f32[1,384], index: 4, kind: input, shape index: {}]
  %s5 = inlined_call_operand.vmem [shape: f32[1,128], index: 5, kind: input, shape index: {}]
  %s6 = inlined_call_operand.hbm [shape: bf16[128,128], index: 6, kind: input, shape index: {}]
  %s7 = inlined_call_operand.vmem [shape: f32[1,128], index: 7, kind: input, shape index: {}]
  %s8 = inlined_call_operand.hbm [shape: f32[8,128], index: 8, kind: output, shape index: {}]
  %s9 = sld [smem:[#allocation0]]
  $region58: #{tpu_custom_call.1} parent=0
    _
  %s11 = ssub.s32 1, %s9
  %s12 = scalar_select 0, %s11, %s9
  $region1: #{tpu_custom_call.1} parent=0
    #allocation2 [shape = 'u8[16384]{0}', space=vmem, size = 0x4000, scoped, tag = 'input window, operand 0, single buffered']
    #allocation3 [shape = 's32[1]{0}', space=sflag, size = 0x4, scoped, tag = 'scoped memory for tpu_custom_call.1']
    #allocation4 [shape = 's32[1]{0}', space=sflag, size = 0x4, scoped, tag = 'scoped memory for tpu_custom_call.1']
    #allocation5 [shape = 'u8[98304]{0}', space=vmem, size = 0x18000, scoped, tag = 'input window, operand 2, single buffered']
    #allocation6 [shape = 's32[1]{0}', space=sflag, size = 0x4, scoped, tag = 'scoped memory for tpu_custom_call.1']
    #allocation7 [shape = 'u8[98304]{0}', space=vmem, size = 0x18000, scoped, tag = 'input window, operand 3, single buffered']
    #allocation8 [shape = 'u8[32768]{0}', space=vmem, size = 0x8000, scoped, tag = 'input window, operand 6, single buffered']
    #allocation9 [shape = 's32[1]{0}', space=sflag, size = 0x4, scoped, tag = 'scoped memory for tpu_custom_call.1']
    #allocation10 [shape = 'u8[4096]{0}', space=vmem, size = 0x1000, scoped, tag = 'output window, operand 0, single buffered']
    %13 = vsyncpa [#allocation3], 0
    %14 = vsyncpa [#allocation6], 0
    %15 = vsyncpa [#allocation9], 0
    %16 = vsyncpa [#allocation4], 0
    // Predicated region
    $region2: #{tpu_custom_call.1} parent=1 // pred_check
      _
    $region3: #{tpu_custom_call.1} parent=1 // pred_check_branch
      %18 = sbr.rel (0) target = $region5
    $region4: #{tpu_custom_call.1} parent=1 // pred_region
      %s20 = ssub.s32 512, 512
      %21 = vsyncadd [#allocation3], %s20
      %s22 = sshll.u32 [#allocation2], 4
      %s23 = int_to_ptr.vmem [resolvable:$true] %s22
      %28 = dma.hbm_to_vmem [thread:$0]  %s0, 512, %s23, [#allocation3], 64, 64, 4
    $region5: #{tpu_custom_call.1} parent=1 // pred_fallthru
      _
    // Predicated region
    $region6: #{tpu_custom_call.1} parent=1 // pred_check
      _
    $region7: #{tpu_custom_call.1} parent=1 // pred_check_branch
      %30 = sbr.rel (0) target = $region9
    $region8: #{tpu_custom_call.1} parent=1 // pred_region
      _
    $region9: #{tpu_custom_call.1} parent=1 // pred_fallthru
      _
    // Predicated region
    $region10: #{tpu_custom_call.1} parent=1 // pred_check
      _
    $region11: #{tpu_custom_call.1} parent=1 // pred_check_branch
      %32 = sbr.rel (0) target = $region13
    $region12: #{tpu_custom_call.1} parent=1 // pred_region
      %s34 = ssub.s32 3072, 3072
      %35 = vsyncadd [#allocation6], %s34
      %s36 = sshll.u32 [#allocation5], 4
      %s37 = int_to_ptr.vmem [resolvable:$true] %s36
      %42 = dma.hbm_to_vmem [thread:$0]  %s2, 3072, %s37, [#allocation6], 192, 192, 12
    $region13: #{tpu_custom_call.1} parent=1 // pred_fallthru
      _
    // Predicated region
    $region14: #{tpu_custom_call.1} parent=1 // pred_check
      _
    $region15: #{tpu_custom_call.1} parent=1 // pred_check_branch
      %44 = sbr.rel (0) target = $region17
    $region16: #{tpu_custom_call.1} parent=1 // pred_region
      %s46 = ssub.s32 3072, 3072
      %47 = vsyncadd [#allocation6], %s46
      %s48 = sshll.u32 [#allocation7], 4
      %s49 = int_to_ptr.vmem [resolvable:$true] %s48
      %54 = dma.hbm_to_vmem [thread:$0]  %s3, 3072, %s49, [#allocation6], 192, 192, 12
    $region17: #{tpu_custom_call.1} parent=1 // pred_fallthru
      _
    // Predicated region
    $region18: #{tpu_custom_call.1} parent=1 // pred_check
      _
    $region19: #{tpu_custom_call.1} parent=1 // pred_check_branch
      %56 = sbr.rel (0) target = $region21
    $region20: #{tpu_custom_call.1} parent=1 // pred_region
      _
    $region21: #{tpu_custom_call.1} parent=1 // pred_fallthru
      _
    // Predicated region
    $region22: #{tpu_custom_call.1} parent=1 // pred_check
      _
    $region23: #{tpu_custom_call.1} parent=1 // pred_check_branch
      %58 = sbr.rel (0) target = $region25
    $region24: #{tpu_custom_call.1} parent=1 // pred_region
      _
    $region25: #{tpu_custom_call.1} parent=1 // pred_fallthru
      _
    // Predicated region
    $region26: #{tpu_custom_call.1} parent=1 // pred_check
      _
    $region27: #{tpu_custom_call.1} parent=1 // pred_check_branch
      %60 = sbr.rel (0) target = $region29
    $region28: #{tpu_custom_call.1} parent=1 // pred_region
      %s62 = ssub.s32 1024, 1024
      %63 = vsyncadd [#allocation9], %s62
      %s64 = sshll.u32 [#allocation8], 4
      %s65 = int_to_ptr.vmem [resolvable:$true] %s64
      %70 = dma.hbm_to_vmem [thread:$0]  %s6, 1024, %s65, [#allocation9], 64, 64, 4
    $region29: #{tpu_custom_call.1} parent=1 // pred_fallthru
      _
    // Predicated region
    $region30: #{tpu_custom_call.1} parent=1 // pred_check
      _
    $region31: #{tpu_custom_call.1} parent=1 // pred_check_branch
      %72 = sbr.rel (0) target = $region33
    $region32: #{tpu_custom_call.1} parent=1 // pred_region
      _
    $region33: #{tpu_custom_call.1} parent=1 // pred_fallthru
      _
    // Predicated region
    $region34: #{tpu_custom_call.1} parent=1 // pred_check
      _
    $region35: #{tpu_custom_call.1} parent=1 // pred_check_branch
      %74 = sbr.rel (0) target = $region37
    $region36: #{tpu_custom_call.1} parent=1 // pred_region
      %75 = dma.done [#allocation3], 512
    $region37: #{tpu_custom_call.1} parent=1 // pred_fallthru
      _
    // Predicated region
    $region38: #{tpu_custom_call.1} parent=1 // pred_check
      _
    $region39: #{tpu_custom_call.1} parent=1 // pred_check_branch
      %77 = sbr.rel (0) target = $region41
    $region40: #{tpu_custom_call.1} parent=1 // pred_region
      %78 = dma.done [#allocation6], 3072
    $region41: #{tpu_custom_call.1} parent=1 // pred_fallthru
      _
    // Predicated region
    $region42: #{tpu_custom_call.1} parent=1 // pred_check
      _
    $region43: #{tpu_custom_call.1} parent=1 // pred_check_branch
      %80 = sbr.rel (0) target = $region45
    $region44: #{tpu_custom_call.1} parent=1 // pred_region
      %81 = dma.done [#allocation6], 3072
    $region45: #{tpu_custom_call.1} parent=1 // pred_fallthru
      _
    // Predicated region
    $region46: #{tpu_custom_call.1} parent=1 // pred_check
      _
    $region47: #{tpu_custom_call.1} parent=1 // pred_check_branch
      %83 = sbr.rel (0) target = $region49
    $region48: #{tpu_custom_call.1} parent=1 // pred_region
      %84 = dma.done [#allocation9], 1024
    $region49: #{tpu_custom_call.1} parent=1 // pred_fallthru
      _
    %v86 = vld [vmem:[%s1] sm:$0xff]
    %v87 = vld [vmem:[#allocation2] sm:$0xf]
    %v88 = vld [vmem:[#allocation2 + $0x4] sm:$0xf]
    %v89 = vld [vmem:[#allocation2 + $0x8] sm:$0xf]
    %v90 = vld [vmem:[#allocation2 + $0xc] sm:$0xf]
    %v91 = vld [vmem:[#allocation2 + $0x10] sm:$0xf]
    %v92 = vld [vmem:[#allocation2 + $0x14] sm:$0xf]
    %v93 = vld [vmem:[#allocation2 + $0x18] sm:$0xf]
    %v94 = vld [vmem:[#allocation2 + $0x1c] sm:$0xf]
    %v95 = vld [vmem:[#allocation5] sm:$0xff]
    %v96 = vld [vmem:[#allocation5 + $0x8] sm:$0xf]
    %v97 = vld [vmem:[#allocation5 + $0xc] sm:$0xff]
    %v98 = vld [vmem:[#allocation5 + $0x14] sm:$0xf]
    %v99 = vld [vmem:[#allocation5 + $0x18] sm:$0xff]
    %v100 = vld [vmem:[#allocation5 + $0x20] sm:$0xf]
    %v101 = vld [vmem:[#allocation5 + $0x24] sm:$0xff]
    %v102 = vld [vmem:[#allocation5 + $0x2c] sm:$0xf]
    %v103 = vld [vmem:[#allocation5 + $0x30] sm:$0xff]
    %v104 = vld [vmem:[#allocation5 + $0x38] sm:$0xf]
    %v105 = vld [vmem:[#allocation5 + $0x3c] sm:$0xff]
    %v106 = vld [vmem:[#allocation5 + $0x44] sm:$0xf]
    %v107 = vld [vmem:[#allocation5 + $0x48] sm:$0xff]
    %v108 = vld [vmem:[#allocation5 + $0x50] sm:$0xf]
    %v109 = vld [vmem:[#allocation5 + $0x54] sm:$0xff]
    %v110 = vld [vmem:[#allocation5 + $0x5c] sm:$0xf]
    %v111 = vld [vmem:[#allocation5 + $0x60] sm:$0xff]
    %v112 = vld [vmem:[#allocation5 + $0x68] sm:$0xf]
    %v113 = vld [vmem:[#allocation5 + $0x6c] sm:$0xff]
    %v114 = vld [vmem:[#allocation5 + $0x74] sm:$0xf]
    %v115 = vld [vmem:[#allocation5 + $0x78] sm:$0xff]
    %v116 = vld [vmem:[#allocation5 + $0x80] sm:$0xf]
    %v117 = vld [vmem:[#allocation5 + $0x84] sm:$0xff]
    %v118 = vld [vmem:[#allocation5 + $0x8c] sm:$0xf]
    %v119 = vld [vmem:[#allocation5 + $0x90] sm:$0xff]
    %v120 = vld [vmem:[#allocation5 + $0x98] sm:$0xf]
    %v121 = vld [vmem:[#allocation5 + $0x9c] sm:$0xff]
    %v122 = vld [vmem:[#allocation5 + $0xa4] sm:$0xf]
    %v123 = vld [vmem:[#allocation5 + $0xa8] sm:$0xff]
    %v124 = vld [vmem:[#allocation5 + $0xb0] sm:$0xf]
    %v125 = vld [vmem:[#allocation5 + $0xb4] sm:$0xff]
    %v126 = vld [vmem:[#allocation5 + $0xbc] sm:$0xf]
    %v127 = vld [vmem:[%s4] sm:$0x7]
    %v129 = vlaneseq
    %v130 = vshrl.u32 %v129, 7
    %v131 = vsub.s32 0, %v130
    %v132 = vrot.slane %v127, %v131
    %v133 = vlaneseq
    %v134 = vshrl.u32 %v133, 7
    %v135 = vsub.s32 1, %v134
    %v136 = vrot.slane %v127, %v135
    %v137 = vlaneseq
    %v138 = vshrl.u32 %v137, 7
    %v139 = vsub.s32 2, %v138
    %v140 = vrot.slane %v127, %v139
    %v152 = vunpack.c.l.b16 %v87
    %v153 = vunpack.c.l.b16 %v88
    %v154 = vunpack.c.l.b16 %v89
    %v155 = vunpack.c.l.b16 %v90
    %v156 = vunpack.c.l.b16 %v91
    %v157 = vunpack.c.l.b16 %v92
    %v158 = vunpack.c.l.b16 %v93
    %v159 = vunpack.c.l.b16 %v94
    %v160 = vpack.c.b16 %v153, %v152
    %v161 = vpack.c.b16 %v155, %v154
    %v162 = vpack.c.b16 %v157, %v156
    %v163 = vpack.c.b16 %v159, %v158
    %v200 = vunpack.c.l.b16 %v95
    %v201 = vunpack.c.h.b16 %v95
    %v202 = vunpack.c.l.b16 %v96
    %v203 = vunpack.c.l.b16 %v97
    %v204 = vunpack.c.h.b16 %v97
    %v205 = vunpack.c.l.b16 %v98
    %v206 = vunpack.c.l.b16 %v99
    %v207 = vunpack.c.h.b16 %v99
    %v208 = vunpack.c.l.b16 %v100
    %v209 = vunpack.c.l.b16 %v101
    %v210 = vunpack.c.h.b16 %v101
    %v211 = vunpack.c.l.b16 %v102
    %v212 = vunpack.c.l.b16 %v103
    %v213 = vunpack.c.h.b16 %v103
    %v214 = vunpack.c.l.b16 %v104
    %v215 = vunpack.c.l.b16 %v105
    %v216 = vunpack.c.h.b16 %v105
    %v217 = vunpack.c.l.b16 %v106
    %v218 = vunpack.c.l.b16 %v107
    %v219 = vunpack.c.h.b16 %v107
    %v220 = vunpack.c.l.b16 %v108
    %v221 = vunpack.c.l.b16 %v109
    %v222 = vunpack.c.h.b16 %v109
    %v223 = vunpack.c.l.b16 %v110
    %v224 = vunpack.c.l.b16 %v111
    %v225 = vunpack.c.h.b16 %v111
    %v226 = vunpack.c.l.b16 %v112
    %v227 = vunpack.c.l.b16 %v113
    %v228 = vunpack.c.h.b16 %v113
    %v229 = vunpack.c.l.b16 %v114
    %v230 = vunpack.c.l.b16 %v115
    %v231 = vunpack.c.h.b16 %v115
    %v232 = vunpack.c.l.b16 %v116
    %v233 = vunpack.c.l.b16 %v117
    %v234 = vunpack.c.h.b16 %v117
    %v235 = vunpack.c.l.b16 %v118
    %v236 = vunpack.c.l.b16 %v119
    %v237 = vunpack.c.h.b16 %v119
    %v238 = vunpack.c.l.b16 %v120
    %v239 = vunpack.c.l.b16 %v121
    %v240 = vunpack.c.h.b16 %v121
    %v241 = vunpack.c.l.b16 %v122
    %v242 = vunpack.c.l.b16 %v123
    %v243 = vunpack.c.h.b16 %v123
    %v244 = vunpack.c.l.b16 %v124
    %v245 = vunpack.c.l.b16 %v125
    %v246 = vunpack.c.h.b16 %v125
    %v247 = vunpack.c.l.b16 %v126
    %v248 = vpack.c.b16 %v203, %v200
    %v249 = vpack.c.b16 %v204, %v201
    %v250 = vpack.c.b16 %v205, %v202
    %v251 = vpack.c.b16 %v209, %v206
    %v252 = vpack.c.b16 %v210, %v207
    %v253 = vpack.c.b16 %v211, %v208
    %v254 = vpack.c.b16 %v215, %v212
    %v255 = vpack.c.b16 %v216, %v213
    %v256 = vpack.c.b16 %v217, %v214
    %v257 = vpack.c.b16 %v221, %v218
    %v258 = vpack.c.b16 %v222, %v219
    %v259 = vpack.c.b16 %v223, %v220
    %v260 = vpack.c.b16 %v227, %v224
    %v261 = vpack.c.b16 %v228, %v225
    %v262 = vpack.c.b16 %v229, %v226
    %v263 = vpack.c.b16 %v233, %v230
    %v264 = vpack.c.b16 %v234, %v231
    %v265 = vpack.c.b16 %v235, %v232
    %v266 = vpack.c.b16 %v239, %v236
    %v267 = vpack.c.b16 %v240, %v237
    %v268 = vpack.c.b16 %v241, %v238
    %v269 = vpack.c.b16 %v245, %v242
    %v270 = vpack.c.b16 %v246, %v243
    %v271 = vpack.c.b16 %v247, %v244
    %296 = vmatprep.subr.bf16.mxu0 %v249
    %297 = vmatpush1.bf16.msra.mxu0 %v248
    %298 = vmatprep.subr.bf16.mxu0 %v252
    %299 = vmatpush1.bf16.msra.mxu0 %v251
    %300 = vmatprep.subr.bf16.mxu0 %v255
    %301 = vmatpush1.bf16.msra.mxu0 %v254
    %302 = vmatprep.subr.bf16.mxu0 %v258
    %303 = vmatpush1.bf16.msra.mxu0 %v257
    %304 = vmatprep.subr.bf16.mxu0 %v261
    %305 = vmatpush1.bf16.msra.mxu0 %v260
    %306 = vmatprep.subr.bf16.mxu0 %v264
    %307 = vmatpush1.bf16.msra.mxu0 %v263
    %308 = vmatprep.subr.bf16.mxu0 %v267
    %309 = vmatpush1.bf16.msra.mxu0 %v266
    %310 = vmatprep.subr.bf16.mxu0 %v270
    %311 = vmatpush1.bf16.msra.mxu0 %v269
    %312 = vmatprep.subr.bf16.mxu0 0
    %313 = vmatpush1.bf16.msra.mxu0 0
    %314 = vmatprep.subr.bf16.mxu0 0
    %315 = vmatpush1.bf16.msra.mxu0 0
    %316 = vmatprep.subr.bf16.mxu0 0
    %317 = vmatpush1.bf16.msra.mxu0 0
    %318 = vmatprep.subr.bf16.mxu0 0
    %319 = vmatpush1.bf16.msra.mxu0 0
    %320 = vmatprep.subr.bf16.mxu0 0
    %321 = vmatpush1.bf16.msra.mxu0 0
    %322 = vmatprep.subr.bf16.mxu0 0
    %323 = vmatpush1.bf16.msra.mxu0 0
    %324 = vmatprep.subr.bf16.mxu0 0
    %325 = vmatpush1.bf16.msra.mxu0 0
    %326 = vmatprep.subr.bf16.mxu0 0
    %327 = vmatpush1.bf16.msra.mxu0 0
    %328 = vmatprep.mubr.bf16.mxu0 0
    %329 = vmatmul.mubr.bf16.gmra.mrb[0].mxu0 %v160
    %v330 = vpop.f32.mrb[0].mxu0
    %v331 = vadd.f32 %v132, %v330
    %v332 = vpop.f32.mrb[0].mxu0
    %v333 = vadd.f32 %v136, %v332
    %v334 = vpop.f32.mrb[0].mxu0
    %v335 = vadd.f32 %v132, %v334
    %v336 = vpop.f32.mrb[0].mxu0
    %v337 = vadd.f32 %v136, %v336
    %338 = vmatprep.mubr.bf16.mxu0 0
    %339 = vmatmul.mubr.bf16.gmra.mrb[0].mxu0 %v161
    %v340 = vpop.f32.mrb[0].mxu0
    %v341 = vadd.f32 %v132, %v340
    %v342 = vpop.f32.mrb[0].mxu0
    %v343 = vadd.f32 %v136, %v342
    %v344 = vpop.f32.mrb[0].mxu0
    %v345 = vadd.f32 %v132, %v344
    %v346 = vpop.f32.mrb[0].mxu0
    %v347 = vadd.f32 %v136, %v346
    %348 = vmatprep.mubr.bf16.mxu0 0
    %349 = vmatmul.mubr.bf16.gmra.mrb[0].mxu0 %v162
    %v350 = vpop.f32.mrb[0].mxu0
    %v351 = vadd.f32 %v132, %v350
    %v352 = vpop.f32.mrb[0].mxu0
    %v353 = vadd.f32 %v136, %v352
    %v354 = vpop.f32.mrb[0].mxu0
    %v355 = vadd.f32 %v132, %v354
    %v356 = vpop.f32.mrb[0].mxu0
    %v357 = vadd.f32 %v136, %v356
    %358 = vmatprep.mubr.bf16.mxu0 0
    %359 = vmatmul.mubr.bf16.gmra.mrb[0].mxu0 %v163
    %v360 = vpop.f32.mrb[0].mxu0
    %v361 = vadd.f32 %v132, %v360
    %v362 = vpop.f32.mrb[0].mxu0
    %v363 = vadd.f32 %v136, %v362
    %v364 = vpop.f32.mrb[0].mxu0
    %v365 = vadd.f32 %v132, %v364
    %v366 = vpop.f32.mrb[0].mxu0
    %v367 = vadd.f32 %v136, %v366
    %368 = vdwg.mxu0
    %369 = vmatprep.subr.bf16.mxu0 0
    %370 = vmatpush1.bf16.msra.mxu0 %v250
    %371 = vmatprep.subr.bf16.mxu0 0
    %372 = vmatpush1.bf16.msra.mxu0 %v253
    %373 = vmatprep.subr.bf16.mxu0 0
    %374 = vmatpush1.bf16.msra.mxu0 %v256
    %375 = vmatprep.subr.bf16.mxu0 0
    %376 = vmatpush1.bf16.msra.mxu0 %v259
    %377 = vmatprep.subr.bf16.mxu0 0
    %378 = vmatpush1.bf16.msra.mxu0 %v262
    %379 = vmatprep.subr.bf16.mxu0 0
    %380 = vmatpush1.bf16.msra.mxu0 %v265
    %381 = vmatprep.subr.bf16.mxu0 0
    %382 = vmatpush1.bf16.msra.mxu0 %v268
    %383 = vmatprep.subr.bf16.mxu0 0
    %384 = vmatpush1.bf16.msra.mxu0 %v271
    %385 = vmatprep.subr.bf16.mxu0 0
    %386 = vmatpush1.bf16.msra.mxu0 0
    %387 = vmatprep.subr.bf16.mxu0 0
    %388 = vmatpush1.bf16.msra.mxu0 0
    %389 = vmatprep.subr.bf16.mxu0 0
    %390 = vmatpush1.bf16.msra.mxu0 0
    %391 = vmatprep.subr.bf16.mxu0 0
    %392 = vmatpush1.bf16.msra.mxu0 0
    %393 = vmatprep.subr.bf16.mxu0 0
    %394 = vmatpush1.bf16.msra.mxu0 0
    %395 = vmatprep.subr.bf16.mxu0 0
    %396 = vmatpush1.bf16.msra.mxu0 0
    %397 = vmatprep.subr.bf16.mxu0 0
    %398 = vmatpush1.bf16.msra.mxu0 0
    %399 = vmatprep.subr.bf16.mxu0 0
    %400 = vmatpush1.bf16.msra.mxu0 0
    %401 = vmatprep.mubr.bf16.mxu0 0
    %402 = vmatmul.mubr.bf16.gmra.mrb[0].mxu0 %v160
    %v403 = vpop.f32.mrb[0].mxu0
    %v404 = vadd.f32 %v140, %v403
    %v405 = vpop.f32.mrb[0].mxu0
    %v406 = vpop.f32.mrb[0].mxu0
    %v407 = vadd.f32 %v140, %v406
    %v408 = vpop.f32.mrb[0].mxu0
    %409 = vmatprep.mubr.bf16.mxu0 0
    %410 = vmatmul.mubr.bf16.gmra.mrb[0].mxu0 %v161
    %v411 = vpop.f32.mrb[0].mxu0
    %v412 = vadd.f32 %v140, %v411
    %v413 = vpop.f32.mrb[0].mxu0
    %v414 = vpop.f32.mrb[0].mxu0
    %v415 = vadd.f32 %v140, %v414
    %v416 = vpop.f32.mrb[0].mxu0
    %417 = vmatprep.mubr.bf16.mxu0 0
    %418 = vmatmul.mubr.bf16.gmra.mrb[0].mxu0 %v162
    %v419 = vpop.f32.mrb[0].mxu0
    %v420 = vadd.f32 %v140, %v419
    %v421 = vpop.f32.mrb[0].mxu0
    %v422 = vpop.f32.mrb[0].mxu0
    %v423 = vadd.f32 %v140, %v422
    %v424 = vpop.f32.mrb[0].mxu0
    %425 = vmatprep.mubr.bf16.mxu0 0
    %426 = vmatmul.mubr.bf16.gmra.mrb[0].mxu0 %v163
    %v427 = vpop.f32.mrb[0].mxu0
    %v428 = vadd.f32 %v140, %v427
    %v429 = vpop.f32.mrb[0].mxu0
    %v430 = vpop.f32.mrb[0].mxu0
    %v431 = vadd.f32 %v140, %v430
    %v432 = vpop.f32.mrb[0].mxu0
    %433 = vdwg.mxu0
    %v434 = vld [vmem:[#allocation7] sm:$0xff]
    %v435 = vld [vmem:[#allocation7 + $0x8] sm:$0xf]
    %v436 = vld [vmem:[#allocation7 + $0xc] sm:$0xff]
    %v437 = vld [vmem:[#allocation7 + $0x14] sm:$0xf]
    %v438 = vld [vmem:[#allocation7 + $0x18] sm:$0xff]
    %v439 = vld [vmem:[#allocation7 + $0x20] sm:$0xf]
    %v440 = vld [vmem:[#allocation7 + $0x24] sm:$0xff]
    %v441 = vld [vmem:[#allocation7 + $0x2c] sm:$0xf]
    %v442 = vld [vmem:[#allocation7 + $0x30] sm:$0xff]
    %v443 = vld [vmem:[#allocation7 + $0x38] sm:$0xf]
    %v444 = vld [vmem:[#allocation7 + $0x3c] sm:$0xff]
    %v445 = vld [vmem:[#allocation7 + $0x44] sm:$0xf]
    %v446 = vld [vmem:[#allocation7 + $0x48] sm:$0xff]
    %v447 = vld [vmem:[#allocation7 + $0x50] sm:$0xf]
    %v448 = vld [vmem:[#allocation7 + $0x54] sm:$0xff]
    %v449 = vld [vmem:[#allocation7 + $0x5c] sm:$0xf]
    %v450 = vld [vmem:[#allocation7 + $0x60] sm:$0xff]
    %v451 = vld [vmem:[#allocation7 + $0x68] sm:$0xf]
    %v452 = vld [vmem:[#allocation7 + $0x6c] sm:$0xff]
    %v453 = vld [vmem:[#allocation7 + $0x74] sm:$0xf]
    %v454 = vld [vmem:[#allocation7 + $0x78] sm:$0xff]
    %v455 = vld [vmem:[#allocation7 + $0x80] sm:$0xf]
    %v456 = vld [vmem:[#allocation7 + $0x84] sm:$0xff]
    %v457 = vld [vmem:[#allocation7 + $0x8c] sm:$0xf]
    %v458 = vld [vmem:[#allocation7 + $0x90] sm:$0xff]
    %v459 = vld [vmem:[#allocation7 + $0x98] sm:$0xf]
    %v460 = vld [vmem:[#allocation7 + $0x9c] sm:$0xff]
    %v461 = vld [vmem:[#allocation7 + $0xa4] sm:$0xf]
    %v462 = vld [vmem:[#allocation7 + $0xa8] sm:$0xff]
    %v463 = vld [vmem:[#allocation7 + $0xb0] sm:$0xf]
    %v464 = vld [vmem:[#allocation7 + $0xb4] sm:$0xff]
    %v465 = vld [vmem:[#allocation7 + $0xbc] sm:$0xf]
    %v466 = vld [vmem:[%s5] sm:$0x1]
    %v468 = vlaneseq
    %v469 = vshrl.u32 %v468, 7
    %v470 = vsub.s32 0, %v469
    %v471 = vrot.slane %v466, %v470
    %v505 = vunpack.c.l.b16 %v434
    %v506 = vunpack.c.h.b16 %v434
    %v507 = vunpack.c.l.b16 %v435
    %v508 = vunpack.c.l.b16 %v436
    %v509 = vunpack.c.h.b16 %v436
    %v510 = vunpack.c.l.b16 %v437
    %v511 = vunpack.c.l.b16 %v438
    %v512 = vunpack.c.h.b16 %v438
    %v513 = vunpack.c.l.b16 %v439
    %v514 = vunpack.c.l.b16 %v440
    %v515 = vunpack.c.h.b16 %v440
    %v516 = vunpack.c.l.b16 %v441
    %v517 = vunpack.c.l.b16 %v442
    %v518 = vunpack.c.h.b16 %v442
    %v519 = vunpack.c.l.b16 %v443
    %v520 = vunpack.c.l.b16 %v444
    %v521 = vunpack.c.h.b16 %v444
    %v522 = vunpack.c.l.b16 %v445
    %v523 = vunpack.c.l.b16 %v446
    %v524 = vunpack.c.h.b16 %v446
    %v525 = vunpack.c.l.b16 %v447
    %v526 = vunpack.c.l.b16 %v448
    %v527 = vunpack.c.h.b16 %v448
    %v528 = vunpack.c.l.b16 %v449
    %v529 = vunpack.c.l.b16 %v450
    %v530 = vunpack.c.h.b16 %v450
    %v531 = vunpack.c.l.b16 %v451
    %v532 = vunpack.c.l.b16 %v452
    %v533 = vunpack.c.h.b16 %v452
    %v534 = vunpack.c.l.b16 %v453
    %v535 = vunpack.c.l.b16 %v454
    %v536 = vunpack.c.h.b16 %v454
    %v537 = vunpack.c.l.b16 %v455
    %v538 = vunpack.c.l.b16 %v456
    %v539 = vunpack.c.h.b16 %v456
    %v540 = vunpack.c.l.b16 %v457
    %v541 = vunpack.c.l.b16 %v458
    %v542 = vunpack.c.h.b16 %v458
    %v543 = vunpack.c.l.b16 %v459
    %v544 = vunpack.c.l.b16 %v460
    %v545 = vunpack.c.h.b16 %v460
    %v546 = vunpack.c.l.b16 %v461
    %v547 = vunpack.c.l.b16 %v462
    %v548 = vunpack.c.h.b16 %v462
    %v549 = vunpack.c.l.b16 %v463
    %v550 = vunpack.c.l.b16 %v464
    %v551 = vunpack.c.h.b16 %v464
    %v552 = vunpack.c.l.b16 %v465
    %v553 = vpack.c.b16 %v508, %v505
    %v554 = vpack.c.b16 %v509, %v506
    %v555 = vpack.c.b16 %v510, %v507
    %v556 = vpack.c.b16 %v514, %v511
    %v557 = vpack.c.b16 %v515, %v512
    %v558 = vpack.c.b16 %v516, %v513
    %v559 = vpack.c.b16 %v520, %v517
    %v560 = vpack.c.b16 %v521, %v518
    %v561 = vpack.c.b16 %v522, %v519
    %v562 = vpack.c.b16 %v526, %v523
    %v563 = vpack.c.b16 %v527, %v524
    %v564 = vpack.c.b16 %v528, %v525
    %v565 = vpack.c.b16 %v532, %v529
    %v566 = vpack.c.b16 %v533, %v530
    %v567 = vpack.c.b16 %v534, %v531
    %v568 = vpack.c.b16 %v538, %v535
    %v569 = vpack.c.b16 %v539, %v536
    %v570 = vpack.c.b16 %v540, %v537
    %v571 = vpack.c.b16 %v544, %v541
    %v572 = vpack.c.b16 %v545, %v542
    %v573 = vpack.c.b16 %v546, %v543
    %v574 = vpack.c.b16 %v550, %v547
    %v575 = vpack.c.b16 %v551, %v548
    %v576 = vpack.c.b16 %v552, %v549
    %601 = vmatprep.subr.bf16.mxu0 %v554
    %602 = vmatpush1.bf16.msra.mxu0 %v553
    %603 = vmatprep.subr.bf16.mxu0 %v557
    %604 = vmatpush1.bf16.msra.mxu0 %v556
    %605 = vmatprep.subr.bf16.mxu0 %v560
    %606 = vmatpush1.bf16.msra.mxu0 %v559
    %607 = vmatprep.subr.bf16.mxu0 %v563
    %608 = vmatpush1.bf16.msra.mxu0 %v562
    %609 = vmatprep.subr.bf16.mxu0 %v566
    %610 = vmatpush1.bf16.msra.mxu0 %v565
    %611 = vmatprep.subr.bf16.mxu0 %v569
    %612 = vmatpush1.bf16.msra.mxu0 %v568
    %613 = vmatprep.subr.bf16.mxu0 %v572
    %614 = vmatpush1.bf16.msra.mxu0 %v571
    %615 = vmatprep.subr.bf16.mxu0 %v575
    %616 = vmatpush1.bf16.msra.mxu0 %v574
    %617 = vmatprep.subr.bf16.mxu0 0
    %618 = vmatpush1.bf16.msra.mxu0 0
    %619 = vmatprep.subr.bf16.mxu0 0
    %620 = vmatpush1.bf16.msra.mxu0 0
    %621 = vmatprep.subr.bf16.mxu0 0
    %622 = vmatpush1.bf16.msra.mxu0 0
    %623 = vmatprep.subr.bf16.mxu0 0
    %624 = vmatpush1.bf16.msra.mxu0 0
    %625 = vmatprep.subr.bf16.mxu0 0
    %626 = vmatpush1.bf16.msra.mxu0 0
    %627 = vmatprep.subr.bf16.mxu0 0
    %628 = vmatpush1.bf16.msra.mxu0 0
    %629 = vmatprep.subr.bf16.mxu0 0
    %630 = vmatpush1.bf16.msra.mxu0 0
    %631 = vmatprep.subr.bf16.mxu0 0
    %632 = vmatpush1.bf16.msra.mxu0 0
    %633 = vmatprep.mubr.bf16.mxu0 0
    %634 = vmatmul.mubr.bf16.gmra.mrb[0].mxu0 0
    %v635 = vpop.f32.mrb[0].mxu0
    %v636 = vadd.f32 0.0, %v635
    %v637 = vpop.f32.mrb[0].mxu0
    %v638 = vadd.f32 0.0, %v637
    %v639 = vpop.f32.mrb[0].mxu0
    %v640 = vpop.f32.mrb[0].mxu0
    %641 = vdwg.mxu0
    %642 = vmatprep.subr.bf16.mxu0 0
    %643 = vmatpush1.bf16.msra.mxu0 %v555
    %644 = vmatprep.subr.bf16.mxu0 0
    %645 = vmatpush1.bf16.msra.mxu0 %v558
    %646 = vmatprep.subr.bf16.mxu0 0
    %647 = vmatpush1.bf16.msra.mxu0 %v561
    %648 = vmatprep.subr.bf16.mxu0 0
    %649 = vmatpush1.bf16.msra.mxu0 %v564
    %650 = vmatprep.subr.bf16.mxu0 0
    %651 = vmatpush1.bf16.msra.mxu0 %v567
    %652 = vmatprep.subr.bf16.mxu0 0
    %653 = vmatpush1.bf16.msra.mxu0 %v570
    %654 = vmatprep.subr.bf16.mxu0 0
    %655 = vmatpush1.bf16.msra.mxu0 %v573
    %656 = vmatprep.subr.bf16.mxu0 0
    %657 = vmatpush1.bf16.msra.mxu0 %v576
    %658 = vmatprep.subr.bf16.mxu0 0
    %659 = vmatpush1.bf16.msra.mxu0 0
    %660 = vmatprep.subr.bf16.mxu0 0
    %661 = vmatpush1.bf16.msra.mxu0 0
    %662 = vmatprep.subr.bf16.mxu0 0
    %663 = vmatpush1.bf16.msra.mxu0 0
    %664 = vmatprep.subr.bf16.mxu0 0
    %665 = vmatpush1.bf16.msra.mxu0 0
    %666 = vmatprep.subr.bf16.mxu0 0
    %667 = vmatpush1.bf16.msra.mxu0 0
    %668 = vmatprep.subr.bf16.mxu0 0
    %669 = vmatpush1.bf16.msra.mxu0 0
    %670 = vmatprep.subr.bf16.mxu0 0
    %671 = vmatpush1.bf16.msra.mxu0 0
    %672 = vmatprep.subr.bf16.mxu0 0
    %673 = vmatpush1.bf16.msra.mxu0 0
    %674 = vmatprep.mubr.bf16.mxu0 0
    %675 = vmatmul.mubr.bf16.gmra.mrb[0].mxu0 0
    %v676 = vpop.f32.mrb[0].mxu0
    %v677 = vadd.f32 0.0, %v676
    %v678 = vpop.f32.mrb[0].mxu0
    %v679 = vpop.f32.mrb[0].mxu0
    %v680 = vpop.f32.mrb[0].mxu0
    %681 = vdwg.mxu0
    %v682 = vadd.f32 %v331, %v636
    %v683 = vxor.u32 %v682, 2147483648
    %v684 = vmul.f32 %v683, 1.442695
    %v685 = vpow.pop %v684
    %v686 = vadd.f32 %v685, 1.0
    %v687 = vrcp.pop %v686
    %v688 = vmul.f32 1.0, %v687
    %v689 = vadd.f32 %v333, %v638
    %v690 = vxor.u32 %v689, 2147483648
    %v691 = vmul.f32 %v690, 1.442695
    %v692 = vpow.pop %v691
    %v693 = vadd.f32 %v692, 1.0
    %v694 = vrcp.pop %v693
    %v695 = vmul.f32 1.0, %v694
    %v696 = vadd.f32 %v677, %v471
    %v697 = vmul.f32 %v688, %v696
    %v698 = vadd.f32 %v404, %v697
    %v699 = vtanh.pop %v698
    %v700 = vsub.f32 1.0, %v695
    %v701 = vmul.f32 %v700, %v699
    %v702 = vmul.f32 %v695, 0.0
    %v703 = vadd.f32 %v701, %v702
    %vm704 = vcmp.gt.s32.totalorder %v86, 0
    %v705 = vsel %vm704, 1, 0
    %706 = vset.pattern.permute.xlu0 0
    %707 = vperm.xlu0 %706, %v705
    %v708 = vpop.permute.xlu0 %707
    %vm709 = vcmp.eq.s32.totalorder %v708, 1
    %v710 = vsel %vm709, %v703, 0.0
    %v711 = vpack.c.bf16 %v710, %v710
    %712 = vmatprep.subr.bf16.mxu0 %v554
    %713 = vmatpush1.bf16.msra.mxu0 %v553
    %714 = vmatprep.subr.bf16.mxu0 %v557
    %715 = vmatpush1.bf16.msra.mxu0 %v556
    %716 = vmatprep.subr.bf16.mxu0 %v560
    %717 = vmatpush1.bf16.msra.mxu0 %v559
    %718 = vmatprep.subr.bf16.mxu0 %v563
    %719 = vmatpush1.bf16.msra.mxu0 %v562
    %720 = vmatprep.subr.bf16.mxu0 %v566
    %721 = vmatpush1.bf16.msra.mxu0 %v565
    %722 = vmatprep.subr.bf16.mxu0 %v569
    %723 = vmatpush1.bf16.msra.mxu0 %v568
    %724 = vmatprep.subr.bf16.mxu0 %v572
    %725 = vmatpush1.bf16.msra.mxu0 %v571
    %726 = vmatprep.subr.bf16.mxu0 %v575
    %727 = vmatpush1.bf16.msra.mxu0 %v574
    %728 = vmatprep.subr.bf16.mxu0 0
    %729 = vmatpush1.bf16.msra.mxu0 0
    %730 = vmatprep.subr.bf16.mxu0 0
    %731 = vmatpush1.bf16.msra.mxu0 0
    %732 = vmatprep.subr.bf16.mxu0 0
    %733 = vmatpush1.bf16.msra.mxu0 0
    %734 = vmatprep.subr.bf16.mxu0 0
    %735 = vmatpush1.bf16.msra.mxu0 0
    %736 = vmatprep.subr.bf16.mxu0 0
    %737 = vmatpush1.bf16.msra.mxu0 0
    %738 = vmatprep.subr.bf16.mxu0 0
    %739 = vmatpush1.bf16.msra.mxu0 0
    %740 = vmatprep.subr.bf16.mxu0 0
    %741 = vmatpush1.bf16.msra.mxu0 0
    %742 = vmatprep.subr.bf16.mxu0 0
    %743 = vmatpush1.bf16.msra.mxu0 0
    %744 = vmatprep.mubr.bf16.mxu0 0
    %745 = vmatmul.mubr.bf16.gmra.mrb[0].mxu0 %v711
    %v746 = vpop.f32.mrb[0].mxu0
    %v747 = vadd.f32 0.0, %v746
    %v748 = vpop.f32.mrb[0].mxu0
    %v749 = vadd.f32 0.0, %v748
    %v750 = vpop.f32.mrb[0].mxu0
    %v751 = vpop.f32.mrb[0].mxu0
    %752 = vdwg.mxu0
    %753 = vmatprep.subr.bf16.mxu0 0
    %754 = vmatpush1.bf16.msra.mxu0 %v555
    %755 = vmatprep.subr.bf16.mxu0 0
    %756 = vmatpush1.bf16.msra.mxu0 %v558
    %757 = vmatprep.subr.bf16.mxu0 0
    %758 = vmatpush1.bf16.msra.mxu0 %v561
    %759 = vmatprep.subr.bf16.mxu0 0
    %760 = vmatpush1.bf16.msra.mxu0 %v564
    %761 = vmatprep.subr.bf16.mxu0 0
    %762 = vmatpush1.bf16.msra.mxu0 %v567
    %763 = vmatprep.subr.bf16.mxu0 0
    %764 = vmatpush1.bf16.msra.mxu0 %v570
    %765 = vmatprep.subr.bf16.mxu0 0
    %766 = vmatpush1.bf16.msra.mxu0 %v573
    %767 = vmatprep.subr.bf16.mxu0 0
    %768 = vmatpush1.bf16.msra.mxu0 %v576
    %769 = vmatprep.subr.bf16.mxu0 0
    %770 = vmatpush1.bf16.msra.mxu0 0
    %771 = vmatprep.subr.bf16.mxu0 0
    %772 = vmatpush1.bf16.msra.mxu0 0
    %773 = vmatprep.subr.bf16.mxu0 0
    %774 = vmatpush1.bf16.msra.mxu0 0
    %775 = vmatprep.subr.bf16.mxu0 0
    %776 = vmatpush1.bf16.msra.mxu0 0
    %777 = vmatprep.subr.bf16.mxu0 0
    %778 = vmatpush1.bf16.msra.mxu0 0
    %779 = vmatprep.subr.bf16.mxu0 0
    %780 = vmatpush1.bf16.msra.mxu0 0
    %781 = vmatprep.subr.bf16.mxu0 0
    %782 = vmatpush1.bf16.msra.mxu0 0
    %783 = vmatprep.subr.bf16.mxu0 0
    %784 = vmatpush1.bf16.msra.mxu0 0
    %785 = vmatprep.mubr.bf16.mxu0 0
    %786 = vmatmul.mubr.bf16.gmra.mrb[0].mxu0 %v711
    %v787 = vpop.f32.mrb[0].mxu0
    %v788 = vadd.f32 0.0, %v787
    %v789 = vpop.f32.mrb[0].mxu0
    %v790 = vpop.f32.mrb[0].mxu0
    %v791 = vpop.f32.mrb[0].mxu0
    %792 = vdwg.mxu0
    %v793 = vadd.f32 %v335, %v747
    %v794 = vxor.u32 %v793, 2147483648
    %v795 = vmul.f32 %v794, 1.442695
    %v796 = vpow.pop %v795
    %v797 = vadd.f32 %v796, 1.0
    %v798 = vrcp.pop %v797
    %v799 = vmul.f32 1.0, %v798
    %v800 = vadd.f32 %v337, %v749
    %v801 = vxor.u32 %v800, 2147483648
    %v802 = vmul.f32 %v801, 1.442695
    %v803 = vpow.pop %v802
    %v804 = vadd.f32 %v803, 1.0
    %v805 = vrcp.pop %v804
    %v806 = vmul.f32 1.0, %v805
    %v807 = vadd.f32 %v788, %v471
    %v808 = vmul.f32 %v799, %v807
    %v809 = vadd.f32 %v407, %v808
    %v810 = vtanh.pop %v809
    %v811 = vsub.f32 1.0, %v806
    %v812 = vmul.f32 %v811, %v810
    %v813 = vmul.f32 %v806, %v710
    %v814 = vadd.f32 %v812, %v813
    %vm815 = vcmp.gt.s32.totalorder %v86, 1
    %v816 = vsel %vm815, 1, 0
    %817 = vset.pattern.permute.xlu0 0
    %818 = vperm.xlu0 %817, %v816
    %v819 = vpop.permute.xlu0 %818
    %vm820 = vcmp.eq.s32.totalorder %v819, 1
    %v821 = vsel %vm820, %v814, %v710
    %v822 = vpack.c.bf16 %v821, %v821
    %823 = vmatprep.subr.bf16.mxu0 %v554
    %824 = vmatpush1.bf16.msra.mxu0 %v553
    %825 = vmatprep.subr.bf16.mxu0 %v557
    %826 = vmatpush1.bf16.msra.mxu0 %v556
    %827 = vmatprep.subr.bf16.mxu0 %v560
    %828 = vmatpush1.bf16.msra.mxu0 %v559
    %829 = vmatprep.subr.bf16.mxu0 %v563
    %830 = vmatpush1.bf16.msra.mxu0 %v562
    %831 = vmatprep.subr.bf16.mxu0 %v566
    %832 = vmatpush1.bf16.msra.mxu0 %v565
    %833 = vmatprep.subr.bf16.mxu0 %v569
    %834 = vmatpush1.bf16.msra.mxu0 %v568
    %835 = vmatprep.subr.bf16.mxu0 %v572
    %836 = vmatpush1.bf16.msra.mxu0 %v571
    %837 = vmatprep.subr.bf16.mxu0 %v575
    %838 = vmatpush1.bf16.msra.mxu0 %v574
    %839 = vmatprep.subr.bf16.mxu0 0
    %840 = vmatpush1.bf16.msra.mxu0 0
    %841 = vmatprep.subr.bf16.mxu0 0
    %842 = vmatpush1.bf16.msra.mxu0 0
    %843 = vmatprep.subr.bf16.mxu0 0
    %844 = vmatpush1.bf16.msra.mxu0 0
    %845 = vmatprep.subr.bf16.mxu0 0
    %846 = vmatpush1.bf16.msra.mxu0 0
    %847 = vmatprep.subr.bf16.mxu0 0
    %848 = vmatpush1.bf16.msra.mxu0 0
    %849 = vmatprep.subr.bf16.mxu0 0
    %850 = vmatpush1.bf16.msra.mxu0 0
    %851 = vmatprep.subr.bf16.mxu0 0
    %852 = vmatpush1.bf16.msra.mxu0 0
    %853 = vmatprep.subr.bf16.mxu0 0
    %854 = vmatpush1.bf16.msra.mxu0 0
    %855 = vmatprep.mubr.bf16.mxu0 0
    %856 = vmatmul.mubr.bf16.gmra.mrb[0].mxu0 %v822
    %v857 = vpop.f32.mrb[0].mxu0
    %v858 = vadd.f32 0.0, %v857
    %v859 = vpop.f32.mrb[0].mxu0
    %v860 = vadd.f32 0.0, %v859
    %v861 = vpop.f32.mrb[0].mxu0
    %v862 = vpop.f32.mrb[0].mxu0
    %863 = vdwg.mxu0
    %864 = vmatprep.subr.bf16.mxu0 0
    %865 = vmatpush1.bf16.msra.mxu0 %v555
    %866 = vmatprep.subr.bf16.mxu0 0
    %867 = vmatpush1.bf16.msra.mxu0 %v558
    %868 = vmatprep.subr.bf16.mxu0 0
    %869 = vmatpush1.bf16.msra.mxu0 %v561
    %870 = vmatprep.subr.bf16.mxu0 0
    %871 = vmatpush1.bf16.msra.mxu0 %v564
    %872 = vmatprep.subr.bf16.mxu0 0
    %873 = vmatpush1.bf16.msra.mxu0 %v567
    %874 = vmatprep.subr.bf16.mxu0 0
    %875 = vmatpush1.bf16.msra.mxu0 %v570
    %876 = vmatprep.subr.bf16.mxu0 0
    %877 = vmatpush1.bf16.msra.mxu0 %v573
    %878 = vmatprep.subr.bf16.mxu0 0
    %879 = vmatpush1.bf16.msra.mxu0 %v576
    %880 = vmatprep.subr.bf16.mxu0 0
    %881 = vmatpush1.bf16.msra.mxu0 0
    %882 = vmatprep.subr.bf16.mxu0 0
    %883 = vmatpush1.bf16.msra.mxu0 0
    %884 = vmatprep.subr.bf16.mxu0 0
    %885 = vmatpush1.bf16.msra.mxu0 0
    %886 = vmatprep.subr.bf16.mxu0 0
    %887 = vmatpush1.bf16.msra.mxu0 0
    %888 = vmatprep.subr.bf16.mxu0 0
    %889 = vmatpush1.bf16.msra.mxu0 0
    %890 = vmatprep.subr.bf16.mxu0 0
    %891 = vmatpush1.bf16.msra.mxu0 0
    %892 = vmatprep.subr.bf16.mxu0 0
    %893 = vmatpush1.bf16.msra.mxu0 0
    %894 = vmatprep.subr.bf16.mxu0 0
    %895 = vmatpush1.bf16.msra.mxu0 0
    %896 = vmatprep.mubr.bf16.mxu0 0
    %897 = vmatmul.mubr.bf16.gmra.mrb[0].mxu0 %v822
    %v898 = vpop.f32.mrb[0].mxu0
    %v899 = vadd.f32 0.0, %v898
    %v900 = vpop.f32.mrb[0].mxu0
    %v901 = vpop.f32.mrb[0].mxu0
    %v902 = vpop.f32.mrb[0].mxu0
    %903 = vdwg.mxu0
    %v904 = vadd.f32 %v341, %v858
    %v905 = vxor.u32 %v904, 2147483648
    %v906 = vmul.f32 %v905, 1.442695
    %v907 = vpow.pop %v906
    %v908 = vadd.f32 %v907, 1.0
    %v909 = vrcp.pop %v908
    %v910 = vmul.f32 1.0, %v909
    %v911 = vadd.f32 %v343, %v860
    %v912 = vxor.u32 %v911, 2147483648
    %v913 = vmul.f32 %v912, 1.442695
    %v914 = vpow.pop %v913
    %v915 = vadd.f32 %v914, 1.0
    %v916 = vrcp.pop %v915
    %v917 = vmul.f32 1.0, %v916
    %v918 = vadd.f32 %v899, %v471
    %v919 = vmul.f32 %v910, %v918
    %v920 = vadd.f32 %v412, %v919
    %v921 = vtanh.pop %v920
    %v922 = vsub.f32 1.0, %v917
    %v923 = vmul.f32 %v922, %v921
    %v924 = vmul.f32 %v917, %v821
    %v925 = vadd.f32 %v923, %v924
    %vm926 = vcmp.gt.s32.totalorder %v86, 2
    %v927 = vsel %vm926, 1, 0
    %928 = vset.pattern.permute.xlu0 0
    %929 = vperm.xlu0 %928, %v927
    %v930 = vpop.permute.xlu0 %929
    %vm931 = vcmp.eq.s32.totalorder %v930, 1
    %v932 = vsel %vm931, %v925, %v821
    %v933 = vpack.c.bf16 %v932, %v932
    %934 = vmatprep.subr.bf16.mxu0 %v554
    %935 = vmatpush1.bf16.msra.mxu0 %v553
    %936 = vmatprep.subr.bf16.mxu0 %v557
    %937 = vmatpush1.bf16.msra.mxu0 %v556
    %938 = vmatprep.subr.bf16.mxu0 %v560
    %939 = vmatpush1.bf16.msra.mxu0 %v559
    %940 = vmatprep.subr.bf16.mxu0 %v563
    %941 = vmatpush1.bf16.msra.mxu0 %v562
    %942 = vmatprep.subr.bf16.mxu0 %v566
    %943 = vmatpush1.bf16.msra.mxu0 %v565
    %944 = vmatprep.subr.bf16.mxu0 %v569
    %945 = vmatpush1.bf16.msra.mxu0 %v568
    %946 = vmatprep.subr.bf16.mxu0 %v572
    %947 = vmatpush1.bf16.msra.mxu0 %v571
    %948 = vmatprep.subr.bf16.mxu0 %v575
    %949 = vmatpush1.bf16.msra.mxu0 %v574
    %950 = vmatprep.subr.bf16.mxu0 0
    %951 = vmatpush1.bf16.msra.mxu0 0
    %952 = vmatprep.subr.bf16.mxu0 0
    %953 = vmatpush1.bf16.msra.mxu0 0
    %954 = vmatprep.subr.bf16.mxu0 0
    %955 = vmatpush1.bf16.msra.mxu0 0
    %956 = vmatprep.subr.bf16.mxu0 0
    %957 = vmatpush1.bf16.msra.mxu0 0
    %958 = vmatprep.subr.bf16.mxu0 0
    %959 = vmatpush1.bf16.msra.mxu0 0
    %960 = vmatprep.subr.bf16.mxu0 0
    %961 = vmatpush1.bf16.msra.mxu0 0
    %962 = vmatprep.subr.bf16.mxu0 0
    %963 = vmatpush1.bf16.msra.mxu0 0
    %964 = vmatprep.subr.bf16.mxu0 0
    %965 = vmatpush1.bf16.msra.mxu0 0
    %966 = vmatprep.mubr.bf16.mxu0 0
    %967 = vmatmul.mubr.bf16.gmra.mrb[0].mxu0 %v933
    %v968 = vpop.f32.mrb[0].mxu0
    %v969 = vadd.f32 0.0, %v968
    %v970 = vpop.f32.mrb[0].mxu0
    %v971 = vadd.f32 0.0, %v970
    %v972 = vpop.f32.mrb[0].mxu0
    %v973 = vpop.f32.mrb[0].mxu0
    %974 = vdwg.mxu0
    %975 = vmatprep.subr.bf16.mxu0 0
    %976 = vmatpush1.bf16.msra.mxu0 %v555
    %977 = vmatprep.subr.bf16.mxu0 0
    %978 = vmatpush1.bf16.msra.mxu0 %v558
    %979 = vmatprep.subr.bf16.mxu0 0
    %980 = vmatpush1.bf16.msra.mxu0 %v561
    %981 = vmatprep.subr.bf16.mxu0 0
    %982 = vmatpush1.bf16.msra.mxu0 %v564
    %983 = vmatprep.subr.bf16.mxu0 0
    %984 = vmatpush1.bf16.msra.mxu0 %v567
    %985 = vmatprep.subr.bf16.mxu0 0
    %986 = vmatpush1.bf16.msra.mxu0 %v570
    %987 = vmatprep.subr.bf16.mxu0 0
    %988 = vmatpush1.bf16.msra.mxu0 %v573
    %989 = vmatprep.subr.bf16.mxu0 0
    %990 = vmatpush1.bf16.msra.mxu0 %v576
    %991 = vmatprep.subr.bf16.mxu0 0
    %992 = vmatpush1.bf16.msra.mxu0 0
    %993 = vmatprep.subr.bf16.mxu0 0
    %994 = vmatpush1.bf16.msra.mxu0 0
    %995 = vmatprep.subr.bf16.mxu0 0
    %996 = vmatpush1.bf16.msra.mxu0 0
    %997 = vmatprep.subr.bf16.mxu0 0
    %998 = vmatpush1.bf16.msra.mxu0 0
    %999 = vmatprep.subr.bf16.mxu0 0
    %1000 = vmatpush1.bf16.msra.mxu0 0
    %1001 = vmatprep.subr.bf16.mxu0 0
    %1002 = vmatpush1.bf16.msra.mxu0 0
    %1003 = vmatprep.subr.bf16.mxu0 0
    %1004 = vmatpush1.bf16.msra.mxu0 0
    %1005 = vmatprep.subr.bf16.mxu0 0
    %1006 = vmatpush1.bf16.msra.mxu0 0
    %1007 = vmatprep.mubr.bf16.mxu0 0
    %1008 = vmatmul.mubr.bf16.gmra.mrb[0].mxu0 %v933
    %v1009 = vpop.f32.mrb[0].mxu0
    %v1010 = vadd.f32 0.0, %v1009
    %v1011 = vpop.f32.mrb[0].mxu0
    %v1012 = vpop.f32.mrb[0].mxu0
    %v1013 = vpop.f32.mrb[0].mxu0
    %1014 = vdwg.mxu0
    %v1015 = vadd.f32 %v345, %v969
    %v1016 = vxor.u32 %v1015, 2147483648
    %v1017 = vmul.f32 %v1016, 1.442695
    %v1018 = vpow.pop %v1017
    %v1019 = vadd.f32 %v1018, 1.0
    %v1020 = vrcp.pop %v1019
    %v1021 = vmul.f32 1.0, %v1020
    %v1022 = vadd.f32 %v347, %v971
    %v1023 = vxor.u32 %v1022, 2147483648
    %v1024 = vmul.f32 %v1023, 1.442695
    %v1025 = vpow.pop %v1024
    %v1026 = vadd.f32 %v1025, 1.0
    %v1027 = vrcp.pop %v1026
    %v1028 = vmul.f32 1.0, %v1027
    %v1029 = vadd.f32 %v1010, %v471
    %v1030 = vmul.f32 %v1021, %v1029
    %v1031 = vadd.f32 %v415, %v1030
    %v1032 = vtanh.pop %v1031
    %v1033 = vsub.f32 1.0, %v1028
    %v1034 = vmul.f32 %v1033, %v1032
    %v1035 = vmul.f32 %v1028, %v932
    %v1036 = vadd.f32 %v1034, %v1035
    %vm1037 = vcmp.gt.s32.totalorder %v86, 3
    %v1038 = vsel %vm1037, 1, 0
    %1039 = vset.pattern.permute.xlu0 0
    %1040 = vperm.xlu0 %1039, %v1038
    %v1041 = vpop.permute.xlu0 %1040
    %vm1042 = vcmp.eq.s32.totalorder %v1041, 1
    %v1043 = vsel %vm1042, %v1036, %v932
    %v1044 = vpack.c.bf16 %v1043, %v1043
    %1045 = vmatprep.subr.bf16.mxu0 %v554
    %1046 = vmatpush1.bf16.msra.mxu0 %v553
    %1047 = vmatprep.subr.bf16.mxu0 %v557
    %1048 = vmatpush1.bf16.msra.mxu0 %v556
    %1049 = vmatprep.subr.bf16.mxu0 %v560
    %1050 = vmatpush1.bf16.msra.mxu0 %v559
    %1051 = vmatprep.subr.bf16.mxu0 %v563
    %1052 = vmatpush1.bf16.msra.mxu0 %v562
    %1053 = vmatprep.subr.bf16.mxu0 %v566
    %1054 = vmatpush1.bf16.msra.mxu0 %v565
    %1055 = vmatprep.subr.bf16.mxu0 %v569
    %1056 = vmatpush1.bf16.msra.mxu0 %v568
    %1057 = vmatprep.subr.bf16.mxu0 %v572
    %1058 = vmatpush1.bf16.msra.mxu0 %v571
    %1059 = vmatprep.subr.bf16.mxu0 %v575
    %1060 = vmatpush1.bf16.msra.mxu0 %v574
    %1061 = vmatprep.subr.bf16.mxu0 0
    %1062 = vmatpush1.bf16.msra.mxu0 0
    %1063 = vmatprep.subr.bf16.mxu0 0
    %1064 = vmatpush1.bf16.msra.mxu0 0
    %1065 = vmatprep.subr.bf16.mxu0 0
    %1066 = vmatpush1.bf16.msra.mxu0 0
    %1067 = vmatprep.subr.bf16.mxu0 0
    %1068 = vmatpush1.bf16.msra.mxu0 0
    %1069 = vmatprep.subr.bf16.mxu0 0
    %1070 = vmatpush1.bf16.msra.mxu0 0
    %1071 = vmatprep.subr.bf16.mxu0 0
    %1072 = vmatpush1.bf16.msra.mxu0 0
    %1073 = vmatprep.subr.bf16.mxu0 0
    %1074 = vmatpush1.bf16.msra.mxu0 0
    %1075 = vmatprep.subr.bf16.mxu0 0
    %1076 = vmatpush1.bf16.msra.mxu0 0
    %1077 = vmatprep.mubr.bf16.mxu0 0
    %1078 = vmatmul.mubr.bf16.gmra.mrb[0].mxu0 %v1044
    %v1079 = vpop.f32.mrb[0].mxu0
    %v1080 = vadd.f32 0.0, %v1079
    %v1081 = vpop.f32.mrb[0].mxu0
    %v1082 = vadd.f32 0.0, %v1081
    %v1083 = vpop.f32.mrb[0].mxu0
    %v1084 = vpop.f32.mrb[0].mxu0
    %1085 = vdwg.mxu0
    %1086 = vmatprep.subr.bf16.mxu0 0
    %1087 = vmatpush1.bf16.msra.mxu0 %v555
    %1088 = vmatprep.subr.bf16.mxu0 0
    %1089 = vmatpush1.bf16.msra.mxu0 %v558
    %1090 = vmatprep.subr.bf16.mxu0 0
    %1091 = vmatpush1.bf16.msra.mxu0 %v561
    %1092 = vmatprep.subr.bf16.mxu0 0
    %1093 = vmatpush1.bf16.msra.mxu0 %v564
    %1094 = vmatprep.subr.bf16.mxu0 0
    %1095 = vmatpush1.bf16.msra.mxu0 %v567
    %1096 = vmatprep.subr.bf16.mxu0 0
    %1097 = vmatpush1.bf16.msra.mxu0 %v570
    %1098 = vmatprep.subr.bf16.mxu0 0
    %1099 = vmatpush1.bf16.msra.mxu0 %v573
    %1100 = vmatprep.subr.bf16.mxu0 0
    %1101 = vmatpush1.bf16.msra.mxu0 %v576
    %1102 = vmatprep.subr.bf16.mxu0 0
    %1103 = vmatpush1.bf16.msra.mxu0 0
    %1104 = vmatprep.subr.bf16.mxu0 0
    %1105 = vmatpush1.bf16.msra.mxu0 0
    %1106 = vmatprep.subr.bf16.mxu0 0
    %1107 = vmatpush1.bf16.msra.mxu0 0
    %1108 = vmatprep.subr.bf16.mxu0 0
    %1109 = vmatpush1.bf16.msra.mxu0 0
    %1110 = vmatprep.subr.bf16.mxu0 0
    %1111 = vmatpush1.bf16.msra.mxu0 0
    %1112 = vmatprep.subr.bf16.mxu0 0
    %1113 = vmatpush1.bf16.msra.mxu0 0
    %1114 = vmatprep.subr.bf16.mxu0 0
    %1115 = vmatpush1.bf16.msra.mxu0 0
    %1116 = vmatprep.subr.bf16.mxu0 0
    %1117 = vmatpush1.bf16.msra.mxu0 0
    %1118 = vmatprep.mubr.bf16.mxu0 0
    %1119 = vmatmul.mubr.bf16.gmra.mrb[0].mxu0 %v1044
    %v1120 = vpop.f32.mrb[0].mxu0
    %v1121 = vadd.f32 0.0, %v1120
    %v1122 = vpop.f32.mrb[0].mxu0
    %v1123 = vpop.f32.mrb[0].mxu0
    %v1124 = vpop.f32.mrb[0].mxu0
    %1125 = vdwg.mxu0
    %v1126 = vadd.f32 %v351, %v1080
    %v1127 = vxor.u32 %v1126, 2147483648
    %v1128 = vmul.f32 %v1127, 1.442695
    %v1129 = vpow.pop %v1128
    %v1130 = vadd.f32 %v1129, 1.0
    %v1131 = vrcp.pop %v1130
    %v1132 = vmul.f32 1.0, %v1131
    %v1133 = vadd.f32 %v353, %v1082
    %v1134 = vxor.u32 %v1133, 2147483648
    %v1135 = vmul.f32 %v1134, 1.442695
    %v1136 = vpow.pop %v1135
    %v1137 = vadd.f32 %v1136, 1.0
    %v1138 = vrcp.pop %v1137
    %v1139 = vmul.f32 1.0, %v1138
    %v1140 = vadd.f32 %v1121, %v471
    %v1141 = vmul.f32 %v1132, %v1140
    %v1142 = vadd.f32 %v420, %v1141
    %v1143 = vtanh.pop %v1142
    %v1144 = vsub.f32 1.0, %v1139
    %v1145 = vmul.f32 %v1144, %v1143
    %v1146 = vmul.f32 %v1139, %v1043
    %v1147 = vadd.f32 %v1145, %v1146
    %vm1148 = vcmp.gt.s32.totalorder %v86, 4
    %v1149 = vsel %vm1148, 1, 0
    %1150 = vset.pattern.permute.xlu0 0
    %1151 = vperm.xlu0 %1150, %v1149
    %v1152 = vpop.permute.xlu0 %1151
    %vm1153 = vcmp.eq.s32.totalorder %v1152, 1
    %v1154 = vsel %vm1153, %v1147, %v1043
    %v1155 = vpack.c.bf16 %v1154, %v1154
    %1156 = vmatprep.subr.bf16.mxu0 %v554
    %1157 = vmatpush1.bf16.msra.mxu0 %v553
    %1158 = vmatprep.subr.bf16.mxu0 %v557
    %1159 = vmatpush1.bf16.msra.mxu0 %v556
    %1160 = vmatprep.subr.bf16.mxu0 %v560
    %1161 = vmatpush1.bf16.msra.mxu0 %v559
    %1162 = vmatprep.subr.bf16.mxu0 %v563
    %1163 = vmatpush1.bf16.msra.mxu0 %v562
    %1164 = vmatprep.subr.bf16.mxu0 %v566
    %1165 = vmatpush1.bf16.msra.mxu0 %v565
    %1166 = vmatprep.subr.bf16.mxu0 %v569
    %1167 = vmatpush1.bf16.msra.mxu0 %v568
    %1168 = vmatprep.subr.bf16.mxu0 %v572
    %1169 = vmatpush1.bf16.msra.mxu0 %v571
    %1170 = vmatprep.subr.bf16.mxu0 %v575
    %1171 = vmatpush1.bf16.msra.mxu0 %v574
    %1172 = vmatprep.subr.bf16.mxu0 0
    %1173 = vmatpush1.bf16.msra.mxu0 0
    %1174 = vmatprep.subr.bf16.mxu0 0
    %1175 = vmatpush1.bf16.msra.mxu0 0
    %1176 = vmatprep.subr.bf16.mxu0 0
    %1177 = vmatpush1.bf16.msra.mxu0 0
    %1178 = vmatprep.subr.bf16.mxu0 0
    %1179 = vmatpush1.bf16.msra.mxu0 0
    %1180 = vmatprep.subr.bf16.mxu0 0
    %1181 = vmatpush1.bf16.msra.mxu0 0
    %1182 = vmatprep.subr.bf16.mxu0 0
    %1183 = vmatpush1.bf16.msra.mxu0 0
    %1184 = vmatprep.subr.bf16.mxu0 0
    %1185 = vmatpush1.bf16.msra.mxu0 0
    %1186 = vmatprep.subr.bf16.mxu0 0
    %1187 = vmatpush1.bf16.msra.mxu0 0
    %1188 = vmatprep.mubr.bf16.mxu0 0
    %1189 = vmatmul.mubr.bf16.gmra.mrb[0].mxu0 %v1155
    %v1190 = vpop.f32.mrb[0].mxu0
    %v1191 = vadd.f32 0.0, %v1190
    %v1192 = vpop.f32.mrb[0].mxu0
    %v1193 = vadd.f32 0.0, %v1192
    %v1194 = vpop.f32.mrb[0].mxu0
    %v1195 = vpop.f32.mrb[0].mxu0
    %1196 = vdwg.mxu0
    %1197 = vmatprep.subr.bf16.mxu0 0
    %1198 = vmatpush1.bf16.msra.mxu0 %v555
    %1199 = vmatprep.subr.bf16.mxu0 0
    %1200 = vmatpush1.bf16.msra.mxu0 %v558
    %1201 = vmatprep.subr.bf16.mxu0 0
    %1202 = vmatpush1.bf16.msra.mxu0 %v561
    %1203 = vmatprep.subr.bf16.mxu0 0
    %1204 = vmatpush1.bf16.msra.mxu0 %v564
    %1205 = vmatprep.subr.bf16.mxu0 0
    %1206 = vmatpush1.bf16.msra.mxu0 %v567
    %1207 = vmatprep.subr.bf16.mxu0 0
    %1208 = vmatpush1.bf16.msra.mxu0 %v570
    %1209 = vmatprep.subr.bf16.mxu0 0
    %1210 = vmatpush1.bf16.msra.mxu0 %v573
    %1211 = vmatprep.subr.bf16.mxu0 0
    %1212 = vmatpush1.bf16.msra.mxu0 %v576
    %1213 = vmatprep.subr.bf16.mxu0 0
    %1214 = vmatpush1.bf16.msra.mxu0 0
    %1215 = vmatprep.subr.bf16.mxu0 0
    %1216 = vmatpush1.bf16.msra.mxu0 0
    %1217 = vmatprep.subr.bf16.mxu0 0
    %1218 = vmatpush1.bf16.msra.mxu0 0
    %1219 = vmatprep.subr.bf16.mxu0 0
    %1220 = vmatpush1.bf16.msra.mxu0 0
    %1221 = vmatprep.subr.bf16.mxu0 0
    %1222 = vmatpush1.bf16.msra.mxu0 0
    %1223 = vmatprep.subr.bf16.mxu0 0
    %1224 = vmatpush1.bf16.msra.mxu0 0
    %1225 = vmatprep.subr.bf16.mxu0 0
    %1226 = vmatpush1.bf16.msra.mxu0 0
    %1227 = vmatprep.subr.bf16.mxu0 0
    %1228 = vmatpush1.bf16.msra.mxu0 0
    %1229 = vmatprep.mubr.bf16.mxu0 0
    %1230 = vmatmul.mubr.bf16.gmra.mrb[0].mxu0 %v1155
    %v1231 = vpop.f32.mrb[0].mxu0
    %v1232 = vadd.f32 0.0, %v1231
    %v1233 = vpop.f32.mrb[0].mxu0
    %v1234 = vpop.f32.mrb[0].mxu0
    %v1235 = vpop.f32.mrb[0].mxu0
    %1236 = vdwg.mxu0
    %v1237 = vadd.f32 %v355, %v1191
    %v1238 = vxor.u32 %v1237, 2147483648
    %v1239 = vmul.f32 %v1238, 1.442695
    %v1240 = vpow.pop %v1239
    %v1241 = vadd.f32 %v1240, 1.0
    %v1242 = vrcp.pop %v1241
    %v1243 = vmul.f32 1.0, %v1242
    %v1244 = vadd.f32 %v357, %v1193
    %v1245 = vxor.u32 %v1244, 2147483648
    %v1246 = vmul.f32 %v1245, 1.442695
    %v1247 = vpow.pop %v1246
    %v1248 = vadd.f32 %v1247, 1.0
    %v1249 = vrcp.pop %v1248
    %v1250 = vmul.f32 1.0, %v1249
    %v1251 = vadd.f32 %v1232, %v471
    %v1252 = vmul.f32 %v1243, %v1251
    %v1253 = vadd.f32 %v423, %v1252
    %v1254 = vtanh.pop %v1253
    %v1255 = vsub.f32 1.0, %v1250
    %v1256 = vmul.f32 %v1255, %v1254
    %v1257 = vmul.f32 %v1250, %v1154
    %v1258 = vadd.f32 %v1256, %v1257
    %vm1259 = vcmp.gt.s32.totalorder %v86, 5
    %v1260 = vsel %vm1259, 1, 0
    %1261 = vset.pattern.permute.xlu0 0
    %1262 = vperm.xlu0 %1261, %v1260
    %v1263 = vpop.permute.xlu0 %1262
    %vm1264 = vcmp.eq.s32.totalorder %v1263, 1
    %v1265 = vsel %vm1264, %v1258, %v1154
    %v1266 = vpack.c.bf16 %v1265, %v1265
    %1267 = vmatprep.subr.bf16.mxu0 %v554
    %1268 = vmatpush1.bf16.msra.mxu0 %v553
    %1269 = vmatprep.subr.bf16.mxu0 %v557
    %1270 = vmatpush1.bf16.msra.mxu0 %v556
    %1271 = vmatprep.subr.bf16.mxu0 %v560
    %1272 = vmatpush1.bf16.msra.mxu0 %v559
    %1273 = vmatprep.subr.bf16.mxu0 %v563
    %1274 = vmatpush1.bf16.msra.mxu0 %v562
    %1275 = vmatprep.subr.bf16.mxu0 %v566
    %1276 = vmatpush1.bf16.msra.mxu0 %v565
    %1277 = vmatprep.subr.bf16.mxu0 %v569
    %1278 = vmatpush1.bf16.msra.mxu0 %v568
    %1279 = vmatprep.subr.bf16.mxu0 %v572
    %1280 = vmatpush1.bf16.msra.mxu0 %v571
    %1281 = vmatprep.subr.bf16.mxu0 %v575
    %1282 = vmatpush1.bf16.msra.mxu0 %v574
    %1283 = vmatprep.subr.bf16.mxu0 0
    %1284 = vmatpush1.bf16.msra.mxu0 0
    %1285 = vmatprep.subr.bf16.mxu0 0
    %1286 = vmatpush1.bf16.msra.mxu0 0
    %1287 = vmatprep.subr.bf16.mxu0 0
    %1288 = vmatpush1.bf16.msra.mxu0 0
    %1289 = vmatprep.subr.bf16.mxu0 0
    %1290 = vmatpush1.bf16.msra.mxu0 0
    %1291 = vmatprep.subr.bf16.mxu0 0
    %1292 = vmatpush1.bf16.msra.mxu0 0
    %1293 = vmatprep.subr.bf16.mxu0 0
    %1294 = vmatpush1.bf16.msra.mxu0 0
    %1295 = vmatprep.subr.bf16.mxu0 0
    %1296 = vmatpush1.bf16.msra.mxu0 0
    %1297 = vmatprep.subr.bf16.mxu0 0
    %1298 = vmatpush1.bf16.msra.mxu0 0
    %1299 = vmatprep.mubr.bf16.mxu0 0
    %1300 = vmatmul.mubr.bf16.gmra.mrb[0].mxu0 %v1266
    %v1301 = vpop.f32.mrb[0].mxu0
    %v1302 = vadd.f32 0.0, %v1301
    %v1303 = vpop.f32.mrb[0].mxu0
    %v1304 = vadd.f32 0.0, %v1303
    %v1305 = vpop.f32.mrb[0].mxu0
    %v1306 = vpop.f32.mrb[0].mxu0
    %1307 = vdwg.mxu0
    %1308 = vmatprep.subr.bf16.mxu0 0
    %1309 = vmatpush1.bf16.msra.mxu0 %v555
    %1310 = vmatprep.subr.bf16.mxu0 0
    %1311 = vmatpush1.bf16.msra.mxu0 %v558
    %1312 = vmatprep.subr.bf16.mxu0 0
    %1313 = vmatpush1.bf16.msra.mxu0 %v561
    %1314 = vmatprep.subr.bf16.mxu0 0
    %1315 = vmatpush1.bf16.msra.mxu0 %v564
    %1316 = vmatprep.subr.bf16.mxu0 0
    %1317 = vmatpush1.bf16.msra.mxu0 %v567
    %1318 = vmatprep.subr.bf16.mxu0 0
    %1319 = vmatpush1.bf16.msra.mxu0 %v570
    %1320 = vmatprep.subr.bf16.mxu0 0
    %1321 = vmatpush1.bf16.msra.mxu0 %v573
    %1322 = vmatprep.subr.bf16.mxu0 0
    %1323 = vmatpush1.bf16.msra.mxu0 %v576
    %1324 = vmatprep.subr.bf16.mxu0 0
    %1325 = vmatpush1.bf16.msra.mxu0 0
    %1326 = vmatprep.subr.bf16.mxu0 0
    %1327 = vmatpush1.bf16.msra.mxu0 0
    %1328 = vmatprep.subr.bf16.mxu0 0
    %1329 = vmatpush1.bf16.msra.mxu0 0
    %1330 = vmatprep.subr.bf16.mxu0 0
    %1331 = vmatpush1.bf16.msra.mxu0 0
    %1332 = vmatprep.subr.bf16.mxu0 0
    %1333 = vmatpush1.bf16.msra.mxu0 0
    %1334 = vmatprep.subr.bf16.mxu0 0
    %1335 = vmatpush1.bf16.msra.mxu0 0
    %1336 = vmatprep.subr.bf16.mxu0 0
    %1337 = vmatpush1.bf16.msra.mxu0 0
    %1338 = vmatprep.subr.bf16.mxu0 0
    %1339 = vmatpush1.bf16.msra.mxu0 0
    %1340 = vmatprep.mubr.bf16.mxu0 0
    %1341 = vmatmul.mubr.bf16.gmra.mrb[0].mxu0 %v1266
    %v1342 = vpop.f32.mrb[0].mxu0
    %v1343 = vadd.f32 0.0, %v1342
    %v1344 = vpop.f32.mrb[0].mxu0
    %v1345 = vpop.f32.mrb[0].mxu0
    %v1346 = vpop.f32.mrb[0].mxu0
    %1347 = vdwg.mxu0
    %v1348 = vadd.f32 %v361, %v1302
    %v1349 = vxor.u32 %v1348, 2147483648
    %v1350 = vmul.f32 %v1349, 1.442695
    %v1351 = vpow.pop %v1350
    %v1352 = vadd.f32 %v1351, 1.0
    %v1353 = vrcp.pop %v1352
    %v1354 = vmul.f32 1.0, %v1353
    %v1355 = vadd.f32 %v363, %v1304
    %v1356 = vxor.u32 %v1355, 2147483648
    %v1357 = vmul.f32 %v1356, 1.442695
    %v1358 = vpow.pop %v1357
    %v1359 = vadd.f32 %v1358, 1.0
    %v1360 = vrcp.pop %v1359
    %v1361 = vmul.f32 1.0, %v1360
    %v1362 = vadd.f32 %v1343, %v471
    %v1363 = vmul.f32 %v1354, %v1362
    %v1364 = vadd.f32 %v428, %v1363
    %v1365 = vtanh.pop %v1364
    %v1366 = vsub.f32 1.0, %v1361
    %v1367 = vmul.f32 %v1366, %v1365
    %v1368 = vmul.f32 %v1361, %v1265
    %v1369 = vadd.f32 %v1367, %v1368
    %vm1370 = vcmp.gt.s32.totalorder %v86, 6
    %v1371 = vsel %vm1370, 1, 0
    %1372 = vset.pattern.permute.xlu0 0
    %1373 = vperm.xlu0 %1372, %v1371
    %v1374 = vpop.permute.xlu0 %1373
    %vm1375 = vcmp.eq.s32.totalorder %v1374, 1
    %v1376 = vsel %vm1375, %v1369, %v1265
    %v1377 = vpack.c.bf16 %v1376, %v1376
    %1378 = vmatprep.subr.bf16.mxu0 %v554
    %1379 = vmatpush1.bf16.msra.mxu0 %v553
    %1380 = vmatprep.subr.bf16.mxu0 %v557
    %1381 = vmatpush1.bf16.msra.mxu0 %v556
    %1382 = vmatprep.subr.bf16.mxu0 %v560
    %1383 = vmatpush1.bf16.msra.mxu0 %v559
    %1384 = vmatprep.subr.bf16.mxu0 %v563
    %1385 = vmatpush1.bf16.msra.mxu0 %v562
    %1386 = vmatprep.subr.bf16.mxu0 %v566
    %1387 = vmatpush1.bf16.msra.mxu0 %v565
    %1388 = vmatprep.subr.bf16.mxu0 %v569
    %1389 = vmatpush1.bf16.msra.mxu0 %v568
    %1390 = vmatprep.subr.bf16.mxu0 %v572
    %1391 = vmatpush1.bf16.msra.mxu0 %v571
    %1392 = vmatprep.subr.bf16.mxu0 %v575
    %1393 = vmatpush1.bf16.msra.mxu0 %v574
    %1394 = vmatprep.subr.bf16.mxu0 0
    %1395 = vmatpush1.bf16.msra.mxu0 0
    %1396 = vmatprep.subr.bf16.mxu0 0
    %1397 = vmatpush1.bf16.msra.mxu0 0
    %1398 = vmatprep.subr.bf16.mxu0 0
    %1399 = vmatpush1.bf16.msra.mxu0 0
    %1400 = vmatprep.subr.bf16.mxu0 0
    %1401 = vmatpush1.bf16.msra.mxu0 0
    %1402 = vmatprep.subr.bf16.mxu0 0
    %1403 = vmatpush1.bf16.msra.mxu0 0
    %1404 = vmatprep.subr.bf16.mxu0 0
    %1405 = vmatpush1.bf16.msra.mxu0 0
    %1406 = vmatprep.subr.bf16.mxu0 0
    %1407 = vmatpush1.bf16.msra.mxu0 0
    %1408 = vmatprep.subr.bf16.mxu0 0
    %1409 = vmatpush1.bf16.msra.mxu0 0
    %1410 = vmatprep.mubr.bf16.mxu0 0
    %1411 = vmatmul.mubr.bf16.gmra.mrb[0].mxu0 %v1377
    %v1412 = vpop.f32.mrb[0].mxu0
    %v1413 = vadd.f32 0.0, %v1412
    %v1414 = vpop.f32.mrb[0].mxu0
    %v1415 = vadd.f32 0.0, %v1414
    %v1416 = vpop.f32.mrb[0].mxu0
    %v1417 = vpop.f32.mrb[0].mxu0
    %1418 = vdwg.mxu0
    %1419 = vmatprep.subr.bf16.mxu0 0
    %1420 = vmatpush1.bf16.msra.mxu0 %v555
    %1421 = vmatprep.subr.bf16.mxu0 0
    %1422 = vmatpush1.bf16.msra.mxu0 %v558
    %1423 = vmatprep.subr.bf16.mxu0 0
    %1424 = vmatpush1.bf16.msra.mxu0 %v561
    %1425 = vmatprep.subr.bf16.mxu0 0
    %1426 = vmatpush1.bf16.msra.mxu0 %v564
    %1427 = vmatprep.subr.bf16.mxu0 0
    %1428 = vmatpush1.bf16.msra.mxu0 %v567
    %1429 = vmatprep.subr.bf16.mxu0 0
    %1430 = vmatpush1.bf16.msra.mxu0 %v570
    %1431 = vmatprep.subr.bf16.mxu0 0
    %1432 = vmatpush1.bf16.msra.mxu0 %v573
    %1433 = vmatprep.subr.bf16.mxu0 0
    %1434 = vmatpush1.bf16.msra.mxu0 %v576
    %1435 = vmatprep.subr.bf16.mxu0 0
    %1436 = vmatpush1.bf16.msra.mxu0 0
    %1437 = vmatprep.subr.bf16.mxu0 0
    %1438 = vmatpush1.bf16.msra.mxu0 0
    %1439 = vmatprep.subr.bf16.mxu0 0
    %1440 = vmatpush1.bf16.msra.mxu0 0
    %1441 = vmatprep.subr.bf16.mxu0 0
    %1442 = vmatpush1.bf16.msra.mxu0 0
    %1443 = vmatprep.subr.bf16.mxu0 0
    %1444 = vmatpush1.bf16.msra.mxu0 0
    %1445 = vmatprep.subr.bf16.mxu0 0
    %1446 = vmatpush1.bf16.msra.mxu0 0
    %1447 = vmatprep.subr.bf16.mxu0 0
    %1448 = vmatpush1.bf16.msra.mxu0 0
    %1449 = vmatprep.subr.bf16.mxu0 0
    %1450 = vmatpush1.bf16.msra.mxu0 0
    %1451 = vmatprep.mubr.bf16.mxu0 0
    %1452 = vmatmul.mubr.bf16.gmra.mrb[0].mxu0 %v1377
    %v1453 = vpop.f32.mrb[0].mxu0
    %v1454 = vadd.f32 0.0, %v1453
    %v1455 = vpop.f32.mrb[0].mxu0
    %v1456 = vpop.f32.mrb[0].mxu0
    %v1457 = vpop.f32.mrb[0].mxu0
    %1458 = vdwg.mxu0
    %v1459 = vadd.f32 %v365, %v1413
    %v1460 = vxor.u32 %v1459, 2147483648
    %v1461 = vmul.f32 %v1460, 1.442695
    %v1462 = vpow.pop %v1461
    %v1463 = vadd.f32 %v1462, 1.0
    %v1464 = vrcp.pop %v1463
    %v1465 = vmul.f32 1.0, %v1464
    %v1466 = vadd.f32 %v367, %v1415
    %v1467 = vxor.u32 %v1466, 2147483648
    %v1468 = vmul.f32 %v1467, 1.442695
    %v1469 = vpow.pop %v1468
    %v1470 = vadd.f32 %v1469, 1.0
    %v1471 = vrcp.pop %v1470
    %v1472 = vmul.f32 1.0, %v1471
    %v1473 = vadd.f32 %v1454, %v471
    %v1474 = vmul.f32 %v1465, %v1473
    %v1475 = vadd.f32 %v431, %v1474
    %v1476 = vtanh.pop %v1475
    %v1477 = vsub.f32 1.0, %v1472
    %v1478 = vmul.f32 %v1477, %v1476
    %v1479 = vmul.f32 %v1472, %v1376
    %v1480 = vadd.f32 %v1478, %v1479
    %vm1481 = vcmp.gt.s32.totalorder %v86, 7
    %v1482 = vsel %vm1481, 1, 0
    %1483 = vset.pattern.permute.xlu0 0
    %1484 = vperm.xlu0 %1483, %v1482
    %v1485 = vpop.permute.xlu0 %1484
    %vm1486 = vcmp.eq.s32.totalorder %v1485, 1
    %v1487 = vsel %vm1486, %v1480, %v1376
    %v1488 = vpack.c.bf16 %v1487, %v1487
    %v1489 = vld [vmem:[#allocation8] sm:$0xf]
    %v1490 = vld [vmem:[#allocation8 + $0x4] sm:$0xf]
    %v1491 = vld [vmem:[#allocation8 + $0x8] sm:$0xf]
    %v1492 = vld [vmem:[#allocation8 + $0xc] sm:$0xf]
    %v1493 = vld [vmem:[#allocation8 + $0x10] sm:$0xf]
    %v1494 = vld [vmem:[#allocation8 + $0x14] sm:$0xf]
    %v1495 = vld [vmem:[#allocation8 + $0x18] sm:$0xf]
    %v1496 = vld [vmem:[#allocation8 + $0x1c] sm:$0xf]
    %v1497 = vld [vmem:[#allocation8 + $0x20] sm:$0xf]
    %v1498 = vld [vmem:[#allocation8 + $0x24] sm:$0xf]
    %v1499 = vld [vmem:[#allocation8 + $0x28] sm:$0xf]
    %v1500 = vld [vmem:[#allocation8 + $0x2c] sm:$0xf]
    %v1501 = vld [vmem:[#allocation8 + $0x30] sm:$0xf]
    %v1502 = vld [vmem:[#allocation8 + $0x34] sm:$0xf]
    %v1503 = vld [vmem:[#allocation8 + $0x38] sm:$0xf]
    %v1504 = vld [vmem:[#allocation8 + $0x3c] sm:$0xf]
    %v1505 = vld [vmem:[%s7] sm:$0x1]
    %v1507 = vlaneseq
    %v1508 = vshrl.u32 %v1507, 7
    %v1509 = vsub.s32 0, %v1508
    %v1510 = vrot.slane %v1505, %v1509
    %v1528 = vunpack.c.l.b16 %v1489
    %v1529 = vunpack.c.l.b16 %v1490
    %v1530 = vunpack.c.l.b16 %v1491
    %v1531 = vunpack.c.l.b16 %v1492
    %v1532 = vunpack.c.l.b16 %v1493
    %v1533 = vunpack.c.l.b16 %v1494
    %v1534 = vunpack.c.l.b16 %v1495
    %v1535 = vunpack.c.l.b16 %v1496
    %v1536 = vunpack.c.l.b16 %v1497
    %v1537 = vunpack.c.l.b16 %v1498
    %v1538 = vunpack.c.l.b16 %v1499
    %v1539 = vunpack.c.l.b16 %v1500
    %v1540 = vunpack.c.l.b16 %v1501
    %v1541 = vunpack.c.l.b16 %v1502
    %v1542 = vunpack.c.l.b16 %v1503
    %v1543 = vunpack.c.l.b16 %v1504
    %v1544 = vpack.c.b16 %v1529, %v1528
    %v1545 = vpack.c.b16 %v1531, %v1530
    %v1546 = vpack.c.b16 %v1533, %v1532
    %v1547 = vpack.c.b16 %v1535, %v1534
    %v1548 = vpack.c.b16 %v1537, %v1536
    %v1549 = vpack.c.b16 %v1539, %v1538
    %v1550 = vpack.c.b16 %v1541, %v1540
    %v1551 = vpack.c.b16 %v1543, %v1542
    %1560 = vmatprep.subr.bf16.mxu0 0
    %1561 = vmatpush1.bf16.msra.mxu0 %v1544
    %1562 = vmatprep.subr.bf16.mxu0 0
    %1563 = vmatpush1.bf16.msra.mxu0 %v1545
    %1564 = vmatprep.subr.bf16.mxu0 0
    %1565 = vmatpush1.bf16.msra.mxu0 %v1546
    %1566 = vmatprep.subr.bf16.mxu0 0
    %1567 = vmatpush1.bf16.msra.mxu0 %v1547
    %1568 = vmatprep.subr.bf16.mxu0 0
    %1569 = vmatpush1.bf16.msra.mxu0 %v1548
    %1570 = vmatprep.subr.bf16.mxu0 0
    %1571 = vmatpush1.bf16.msra.mxu0 %v1549
    %1572 = vmatprep.subr.bf16.mxu0 0
    %1573 = vmatpush1.bf16.msra.mxu0 %v1550
    %1574 = vmatprep.subr.bf16.mxu0 0
    %1575 = vmatpush1.bf16.msra.mxu0 %v1551
    %1576 = vmatprep.subr.bf16.mxu0 0
    %1577 = vmatpush1.bf16.msra.mxu0 0
    %1578 = vmatprep.subr.bf16.mxu0 0
    %1579 = vmatpush1.bf16.msra.mxu0 0
    %1580 = vmatprep.subr.bf16.mxu0 0
    %1581 = vmatpush1.bf16.msra.mxu0 0
    %1582 = vmatprep.subr.bf16.mxu0 0
    %1583 = vmatpush1.bf16.msra.mxu0 0
    %1584 = vmatprep.subr.bf16.mxu0 0
    %1585 = vmatpush1.bf16.msra.mxu0 0
    %1586 = vmatprep.subr.bf16.mxu0 0
    %1587 = vmatpush1.bf16.msra.mxu0 0
    %1588 = vmatprep.subr.bf16.mxu0 0
    %1589 = vmatpush1.bf16.msra.mxu0 0
    %1590 = vmatprep.subr.bf16.mxu0 0
    %1591 = vmatpush1.bf16.msra.mxu0 0
    %1592 = vmatprep.mubr.bf16.mxu0 0
    %1593 = vmatmul.mubr.bf16.gmra.mrb[0].mxu0 %v1488
    %v1594 = vpop.f32.mrb[0].mxu0
    %v1595 = vadd.f32 %v1510, %v1594
    %v1596 = vpop.f32.mrb[0].mxu0
    %v1597 = vpop.f32.mrb[0].mxu0
    %v1598 = vpop.f32.mrb[0].mxu0
    %1599 = vdwg.mxu0
    %1600 = vst [vmem:[#allocation10] sm:$0xff] %v1595
    // Predicated region
    $region50: #{tpu_custom_call.1} parent=1 // pred_check
      _
    $region51: #{tpu_custom_call.1} parent=1 // pred_check_branch
      %1602 = sbr.rel (0) target = $region53
    $region52: #{tpu_custom_call.1} parent=1 // pred_region
      %s1604 = ssub.s32 128, 128
      %1605 = vsyncadd [#allocation4], %s1604
      %s1607 = sshll.u32 [#allocation10], 4
      %s1608 = int_to_ptr.vmem [resolvable:$true] %s1607
      %1610 = dma.vmem_to_hbm [thread:$0]  %s1608, 128, %s8, [#allocation4]
    $region53: #{tpu_custom_call.1} parent=1 // pred_fallthru
      _
    // Predicated region
    $region54: #{tpu_custom_call.1} parent=1 // pred_check
      _
    $region55: #{tpu_custom_call.1} parent=1 // pred_check_branch
      %1612 = sbr.rel (0) target = $region57
    $region56: #{tpu_custom_call.1} parent=1 // pred_region
      %1613 = dma.done [#allocation4], 128
    $region57: #{tpu_custom_call.1} parent=1 // pred_fallthru
      _
    %1614 = vsyncpa [#allocation3], 1
    %1615 = vsyncpa [#allocation6], 1
    %1616 = vsyncpa [#allocation9], 1
    %1617 = vsyncpa [#allocation4], 1

</llo_original>
